<compile_context>
chip_gen: v6e
topology: v6e:2x2x1
jax: 0.10.0
libtpu: 0.0.40
codegen_flags: <defaults>
</compile_context>

<pallas_src>
from functools import partial

import jax
import jax.numpy as jnp
from jax import lax
from jax.experimental import pallas as pl
from jax.experimental.pallas import tpu as pltpu


# ----------------------------------------------------------------------------
# Generation-aware tiling / VMEM configuration.
# ----------------------------------------------------------------------------
_CFG_CACHE = {}


def _round_up(x, m):
    return -(-x // m) * m


def _tpu_config():
    if "cfg" in _CFG_CACHE:
        return _CFG_CACHE["cfg"]
    try:
        kind = jax.devices()[0].device_kind.lower()
    except Exception:
        kind = ""
    if "v7" in kind or "7x" in kind:
        # v7x: 64 MiB physical VMEM -> keep the scoped limit conservative.
        cfg = {"vmem": 48 * 1024 * 1024, "tm": 512, "tn": 512}
    elif "v5" in kind or "v6" in kind:
        # v5e/v6e: 128 MiB VMEM, single TensorCore -> big lane-dense tiles.
        cfg = {"vmem": 100 * 1024 * 1024, "tm": 1024, "tn": 1024}
    else:
        cfg = {"vmem": 48 * 1024 * 1024, "tm": 256, "tn": 512}
    _CFG_CACHE["cfg"] = cfg
    return cfg


# ----------------------------------------------------------------------------
# Tiled linear kernel:  out = x @ w + b   (bf16 operands, f32 accumulate).
# Used for the vocab projection.
# ----------------------------------------------------------------------------
def linear_kernel(x_ref, w_ref, b_ref, o_ref):
    acc = jnp.dot(x_ref[...], w_ref[...], preferred_element_type=jnp.float32)
    o_ref[...] = (acc + b_ref[...]).astype(o_ref.dtype)


def linear_forward(x2d, w, b, *, out_dtype=jnp.float32):
    """x2d: (M,K); w: (K,N); b: (1,N) -> (M,N) out_dtype."""
    cfg = _tpu_config()
    x = x2d.astype(jnp.bfloat16)            # pre-cast: halves x DMA traffic
    w = w.astype(jnp.bfloat16)              # halves weight HBM traffic
    M, K = x.shape
    N = w.shape[-1]
    b = jnp.asarray(b, jnp.float32).reshape(1, N)

    tm = min(cfg["tm"], _round_up(M, 8))
    tn = min(cfg["tn"], _round_up(N, 128))
    Mp, Np = _round_up(M, tm), _round_up(N, tn)
    if Mp != M:
        x = jnp.pad(x, ((0, Mp - M), (0, 0)))
    if Np != N:
        w = jnp.pad(w, ((0, 0), (0, Np - N)))
        b = jnp.pad(b, ((0, 0), (0, Np - N)))

    out = pl.pallas_call(
        linear_kernel,
        out_shape=jax.ShapeDtypeStruct((Mp, Np), out_dtype),
        grid_spec=pltpu.PrefetchScalarGridSpec(
            num_scalar_prefetch=0,
            grid=(Mp // tm, Np // tn),
            in_specs=[
                pl.BlockSpec((tm, K), lambda i, j: (i, 0)),
                pl.BlockSpec((K, tn), lambda i, j: (0, j)),
                pl.BlockSpec((1, tn), lambda i, j: (0, j)),
            ],
            out_specs=pl.BlockSpec((tm, tn), lambda i, j: (i, j)),
        ),
        compiler_params=pltpu.CompilerParams(
            dimension_semantics=("parallel", "parallel"),
            vmem_limit_bytes=cfg["vmem"]),
    )(x, w, b)

    if (Mp, Np) != (M, N):
        out = out[:M, :N]
    return out


# ----------------------------------------------------------------------------
# GRU recurrence kernel with fused input projection.
#
# Grid = (time chunks,) [arbitrary/sequential].  Per chunk:
#   prologue : gx = x_chunk(CT*B, E) @ W_ih + b_ih   -> VMEM scratch (f32)
#   loop     : CT recurrence steps, hidden state carried in VMEM scratch,
#              one (B,H)@(H,3H) bf16 matmul per step, gate order (r, z, n).
#   epilogue : lane-dense bf16 store of the chunk's hidden outputs.
# ----------------------------------------------------------------------------
def gru_kernel(x_ref, h0_ref, wih_ref, bih_ref, whh_ref, bhh_ref,
               out_ref, hn_ref, h_scr, gx_scr, o_scr,
               *, ct, bsz, t_total, hidden_dim, guard_tail, hoist_whh, unroll):
    c = pl.program_id(0)
    H = hidden_dim

    @pl.when(c == 0)
    def _():
        h_scr[...] = h0_ref[...]

    # Fused input-to-hidden projection for the whole chunk: one big MXU GEMM;
    # the gate pre-activations stay entirely in VMEM (no HBM round trip).
    gx_scr[...] = jnp.dot(x_ref[...], wih_ref[...],
                          preferred_element_type=jnp.float32) + bih_ref[...]

    bhh = bhh_ref[...]                               # (1, 3H) f32
    # Hoist W_hh only while it comfortably fits the vreg file (H <= 128);
    # for larger H re-read from VMEM inside the step (loads hide under MXU).
    whh_hoisted = whh_ref[...] if hoist_whh else None

    def step(i, carry):
        h = h_scr[...]                               # (B, H) f32
        row = i * bsz
        if bsz % 8 == 0:
            row = pl.multiple_of(row, 8)
        gx = gx_scr[pl.ds(row, bsz), :]              # (B, 3H) f32
        whh = whh_hoisted if hoist_whh else whh_ref[...]
        gh = jnp.dot(h.astype(jnp.bfloat16), whh,
                     preferred_element_type=jnp.float32) + bhh
        r = jax.nn.sigmoid(gx[:, :H] + gh[:, :H])
        z = jax.nn.sigmoid(gx[:, H:2 * H] + gh[:, H:2 * H])
        n = jnp.tanh(gx[:, 2 * H:] + r * gh[:, 2 * H:])
        h_new = (1.0 - z) * n + z * h
        o_scr[pl.ds(row, bsz), :] = h_new
        if guard_tail:
            # Freeze h on zero-padded tail steps so the final hidden is exact.
            valid = (c * ct + i) < t_total
            h_scr[...] = jnp.where(valid, h_new, h)
        else:
            h_scr[...] = h_new
        return carry

    lax.fori_loop(0, ct, step, 0, unroll=unroll)

    # Single lane-dense full-block store of the chunk outputs (bf16).
    out_ref[...] = o_scr[...].astype(out_ref.dtype)

    @pl.when(c == pl.num_programs(0) - 1)
    def _():
        hn_ref[...] = h_scr[...]


def gru_forward(x_emb2d, h0, w_ih, b_ih, w_hh, b_hh, *, T, B, ct_pref=64):
    """x_emb2d: (T*B, E) bf16 time-major; h0: (B,H) f32.

    Returns (outputs2d (T*B, H) bf16, h_final (B, H) f32).
    """
    E = x_emb2d.shape[-1]
    H = h0.shape[-1]
    cfg = _tpu_config()

    # Time chunk: amortize the ~0.35 us grid-step overhead, but keep the
    # per-chunk gate scratch bounded (~4 MiB).
    CT = max(1, min(ct_pref, T))
    while CT > 1 and CT * B * 3 * H * 4 > 4 * 1024 * 1024:
        CT //= 2
    T_pad = _round_up(T, CT)
    if T_pad != T:
        x_emb2d = jnp.pad(x_emb2d, ((0, (T_pad - T) * B), (0, 0)))
    n_chunks = T_pad // CT

    # TODO(synk): on v7x with B >= 32, split the batch across the 2 TCs via a
    # leading "parallel" grid axis; left unsplit here (harmful on v5e/v6e).

    w_ih_bf16 = w_ih.astype(jnp.bfloat16)
    w_hh_bf16 = w_hh.astype(jnp.bfloat16)
    b_ih = jnp.asarray(b_ih, jnp.float32).reshape(1, 3 * H)
    b_hh = jnp.asarray(b_hh, jnp.float32).reshape(1, 3 * H)
    h0 = h0.astype(jnp.float32)

    outputs2d, h_final = pl.pallas_call(
        partial(gru_kernel, ct=CT, bsz=B, t_total=T, hidden_dim=H,
                guard_tail=(T_pad != T), hoist_whh=(H <= 128),
                unroll=min(8, CT)),
        out_shape=(jax.ShapeDtypeStruct((T_pad * B, H), jnp.bfloat16),
                   jax.ShapeDtypeStruct((B, H), jnp.float32)),
        grid_spec=pltpu.PrefetchScalarGridSpec(
            num_scalar_prefetch=0,
            grid=(n_chunks,),
            in_specs=[
                pl.BlockSpec((CT * B, E), lambda c: (c, 0)),       # x chunk
                pl.BlockSpec((B, H), lambda c: (0, 0)),            # h0
                pl.BlockSpec((E, 3 * H), lambda c: (0, 0)),        # W_ih
                pl.BlockSpec((1, 3 * H), lambda c: (0, 0)),        # b_ih
                pl.BlockSpec((H, 3 * H), lambda c: (0, 0)),        # W_hh
                pl.BlockSpec((1, 3 * H), lambda c: (0, 0)),        # b_hh
            ],
            out_specs=[
                pl.BlockSpec((CT * B, H), lambda c: (c, 0)),       # outputs
                pl.BlockSpec((B, H), lambda c: (0, 0)),            # final h
            ],
            scratch_shapes=[
                pltpu.VMEM((B, H), jnp.float32),                   # h carry
                pltpu.VMEM((CT * B, 3 * H), jnp.float32),          # gates_x
                pltpu.VMEM((CT * B, H), jnp.float32),              # chunk out
            ],
        ),
        compiler_params=pltpu.CompilerParams(
            dimension_semantics=("arbitrary",),
            vmem_limit_bytes=cfg["vmem"]),
    )(x_emb2d, h0, w_ih_bf16, b_ih, w_hh_bf16, b_hh)

    if T_pad != T:
        outputs2d = outputs2d[:T * B]
    return outputs2d, h_final


# ----------------------------------------------------------------------------
# Decoder wrapper (mirrors Decoder.forward; encoder_output / encoder_mask are
# accepted but unused, exactly like the PyTorch module).
# ----------------------------------------------------------------------------
def decoder_forward(params, inputs, encoder_output=None, encoder_mask=None,
                    hidden=None):
    T, B = inputs.shape
    H = params["w_hh"].shape[0]
    V = params["w_out"].shape[-1]

    # TODO(synk): fuse the embedding gather into the GRU kernel via scalar-
    # prefetched token ids + pl.Element row gather to avoid materializing the
    # (T*B, E) activations in HBM; kept as a plain-JAX bf16 gather here.
    emb_bf16 = params["emb"].astype(jnp.bfloat16)
    x_emb = jnp.take(emb_bf16, inputs.reshape(-1), axis=0)      # (T*B, E) bf16

    h0 = (jnp.zeros((B, H), jnp.float32) if hidden is None
          else hidden[0].astype(jnp.float32))

    outputs2d, h_final = gru_forward(x_emb, h0,
                                     params["w_ih"], params["b_ih"],
                                     params["w_hh"], params["b_hh"],
                                     T=T, B=B)

    logits2d = linear_forward(outputs2d, params["w_out"], params["b_out"])
    logits = logits2d.reshape(T, B, V)
    return logits, h_final[None]                                # ((T,B,V),(1,B,H))


# ----------------------------------------------------------------------------
# Pure-JAX f32 reference (lax.scan GRU) for correctness checking.
# ----------------------------------------------------------------------------
def decoder_reference(params, inputs, hidden=None):
    T, B = inputs.shape
    H = params["w_hh"].shape[0]
    x_emb = jnp.take(params["emb"], inputs, axis=0)
    h0 = jnp.zeros((B, H), jnp.float32) if hidden is None else hidden[0]
    w_ih, w_hh = params["w_ih"], params["w_hh"]
    b_ih, b_hh = params["b_ih"], params["b_hh"]

    def step(h, x_t):
        gx = x_t @ w_ih + b_ih
        gh = h @ w_hh + b_hh
        r = jax.nn.sigmoid(gx[:, :H] + gh[:, :H])
        z = jax.nn.sigmoid(gx[:, H:2 * H] + gh[:, H:2 * H])
        n = jnp.tanh(gx[:, 2 * H:] + r * gh[:, 2 * H:])
        h_new = (1.0 - z) * n + z * h
        return h_new, h_new

    h_final, outs = lax.scan(step, h0, x_emb)
    logits = outs @ params["w_out"] + params["b_out"]
    return logits, h_final[None]


# ----------------------------------------------------------------------------
def make_params(key, vocab_size, emb_dim, hidden_dim):
    ks = jax.random.split(key, 7)
    s = 0.1
    return {
        # Embedding (vocab, E)
        "emb":   jax.random.normal(ks[0], (vocab_size, emb_dim), jnp.float32) * s,
        # GRU weights, gate order (r, z, n), concatenated & stored as (in, 3H)
        "w_ih":  jax.random.normal(ks[1], (emb_dim, 3 * hidden_dim), jnp.float32) * s,
        "w_hh":  jax.random.normal(ks[2], (hidden_dim, 3 * hidden_dim), jnp.float32) * s,
        "b_ih":  jax.random.normal(ks[3], (1, 3 * hidden_dim), jnp.float32) * s,
        "b_hh":  jax.random.normal(ks[4], (1, 3 * hidden_dim), jnp.float32) * s,
        # Output Linear, stored transposed as (H, V)
        "w_out": jax.random.normal(ks[5], (hidden_dim, vocab_size), jnp.float32) * s,
        "b_out": jax.random.normal(ks[6], (1, vocab_size), jnp.float32) * s,
    }


if __name__ == "__main__":
    # Small but lane-aligned shapes (module defaults: emb=128; hidden kept at
    # 128 here to stay small).
    vocab_size, emb_dim, hidden_dim = 256, 128, 128
    T, B = 8, 8

    key = jax.random.PRNGKey(0)
    pkey, ikey = jax.random.split(key)
    params = make_params(pkey, vocab_size, emb_dim, hidden_dim)
    inputs = jax.random.randint(ikey, (T, B), 0, vocab_size, dtype=jnp.int32)

    logits, hidden = decoder_forward(params, inputs,
                                     encoder_output=None, encoder_mask=None)
    jax.block_until_ready((logits, hidden))

    ref_logits, ref_hidden = decoder_reference(params, inputs)
    assert logits.shape == (T, B, vocab_size)
    assert hidden.shape == (1, B, hidden_dim)
    # bf16 MXU operands / bf16 intermediates (f32 accumulate & f32 gate math)
    # -> slightly looser tolerance vs the f32 reference.
    assert jnp.allclose(logits, ref_logits, atol=3e-2, rtol=3e-2)
    assert jnp.allclose(hidden, ref_hidden, atol=3e-2, rtol=3e-2)

    print("KERNEL_OK")
</pallas_src>

<mosaic_0001>
module attributes {stable_mosaic.version = 11 : i64} {
  func.func @gru_kernel(%arg0: i32, %arg1: memref<64x128xbf16, #tpu.memory_space<vmem>>, %arg2: memref<8x128xf32, #tpu.memory_space<vmem>>, %arg3: memref<128x384xbf16, #tpu.memory_space<vmem>>, %arg4: memref<1x384xf32, #tpu.memory_space<vmem>>, %arg5: memref<128x384xbf16, #tpu.memory_space<vmem>>, %arg6: memref<1x384xf32, #tpu.memory_space<vmem>>, %arg7: memref<64x128xbf16, #tpu.memory_space<vmem>>, %arg8: memref<8x128xf32, #tpu.memory_space<vmem>>, %arg9: memref<8x128xf32, #tpu.memory_space<vmem>>, %arg10: memref<64x384xf32, #tpu.memory_space<vmem>>, %arg11: memref<64x128xf32, #tpu.memory_space<vmem>>) attributes {dimension_semantics = [#tpu.dimension_semantics<arbitrary>], iteration_bounds = array<i64: 1>, scalar_prefetch = 0 : i64, scratch_operands = 3 : i64, tpu.core_type = #tpu.core_type<tc>, window_params = [{transform_indices = @transform_0, window_bounds = array<i64: 64, 128>}, {pipeline_mode = #tpu.pipeline_mode<synchronous>, transform_indices = @transform_1, window_bounds = array<i64: 8, 128>}, {pipeline_mode = #tpu.pipeline_mode<synchronous>, transform_indices = @transform_2, window_bounds = array<i64: 128, 384>}, {pipeline_mode = #tpu.pipeline_mode<synchronous>, transform_indices = @transform_3, window_bounds = array<i64: 1, 384>}, {pipeline_mode = #tpu.pipeline_mode<synchronous>, transform_indices = @transform_4, window_bounds = array<i64: 128, 384>}, {pipeline_mode = #tpu.pipeline_mode<synchronous>, transform_indices = @transform_5, window_bounds = array<i64: 1, 384>}, {transform_indices = @transform_6, window_bounds = array<i64: 64, 128>}, {pipeline_mode = #tpu.pipeline_mode<synchronous>, transform_indices = @transform_7, window_bounds = array<i64: 8, 128>}]} {
    %c0_i32 = arith.constant 0 : i32
    %0 = arith.cmpi eq, %arg0, %c0_i32 : i32
    %1 = arith.extui %0 : i1 to i32
    %c0_i32_0 = arith.constant 0 : i32
    %2 = arith.cmpi ne, %1, %c0_i32_0 : i32
    scf.if %2 {
      %c0_107 = arith.constant 0 : index
      %c0_108 = arith.constant 0 : index
      %322 = vector.load %arg2[%c0_107, %c0_108] : memref<8x128xf32, #tpu.memory_space<vmem>>, vector<8x128xf32>
      %c0_109 = arith.constant 0 : index
      %c0_110 = arith.constant 0 : index
      %323 = vector.load %arg9[%c0_109, %c0_110] : memref<8x128xf32, #tpu.memory_space<vmem>>, vector<8x128xf32>
      tpu.vector_store %arg9[%c0_109, %c0_110], %322 {strides = array<i32>} : memref<8x128xf32, #tpu.memory_space<vmem>>, vector<8x128xf32>,
    } else {
    }
    %c0 = arith.constant 0 : index
    %c0_1 = arith.constant 0 : index
    %3 = vector.load %arg1[%c0, %c0_1] : memref<64x128xbf16, #tpu.memory_space<vmem>>, vector<64x128xbf16>
    %c0_2 = arith.constant 0 : index
    %c0_3 = arith.constant 0 : index
    %4 = vector.load %arg3[%c0_2, %c0_3] : memref<128x384xbf16, #tpu.memory_space<vmem>>, vector<128x384xbf16>
    %cst = arith.constant dense<0.000000e+00> : vector<64x384xf32>
    %5 = tpu.matmul %3, %4, %cst {dimension_numbers = #tpu.dot_dimension_numbers<[1], [0], [0], [1], [0, 0, 1, 1], [], []>} : vector<64x128xbf16>, vector<128x384xbf16>, vector<64x384xf32> -> vector<64x384xf32>
    %c0_4 = arith.constant 0 : index
    %c0_5 = arith.constant 0 : index
    %6 = vector.load %arg4[%c0_4, %c0_5] : memref<1x384xf32, #tpu.memory_space<vmem>>, vector<1x384xf32>
    %7 = vector.broadcast %6 : vector<1x384xf32> to vector<64x384xf32>
    %8 = arith.addf %5, %7 : vector<64x384xf32>
    %c0_6 = arith.constant 0 : index
    %c0_7 = arith.constant 0 : index
    %9 = vector.load %arg10[%c0_6, %c0_7] : memref<64x384xf32, #tpu.memory_space<vmem>>, vector<64x384xf32>
    tpu.vector_store %arg10[%c0_6, %c0_7], %8 {strides = array<i32>} : memref<64x384xf32, #tpu.memory_space<vmem>>, vector<64x384xf32>,
    %c0_8 = arith.constant 0 : index
    %c0_9 = arith.constant 0 : index
    %10 = vector.load %arg6[%c0_8, %c0_9] : memref<1x384xf32, #tpu.memory_space<vmem>>, vector<1x384xf32>
    %c0_10 = arith.constant 0 : index
    %c0_11 = arith.constant 0 : index
    %11 = vector.load %arg5[%c0_10, %c0_11] : memref<128x384xbf16, #tpu.memory_space<vmem>>, vector<128x384xbf16>
    %c0_i32_12 = arith.constant 0 : i32
    %c0_13 = arith.constant 0 : index
    %c0_14 = arith.constant 0 : index
    %12 = vector.load %arg9[%c0_13, %c0_14] : memref<8x128xf32, #tpu.memory_space<vmem>>, vector<8x128xf32>
    %c8_i32 = arith.constant 8 : i32
    %13 = arith.muli %c0_i32_12, %c8_i32 : i32
    %14 = tpu.assume_multiple %13, 8 : i32
    %15 = arith.index_cast %14 : i32 to index
    %c0_15 = arith.constant 0 : index
    %16 = vector.load %arg10[%15, %c0_15] : memref<64x384xf32, #tpu.memory_space<vmem>>, vector<8x384xf32>
    %17 = arith.truncf %12 : vector<8x128xf32> to vector<8x128xbf16>
    %cst_16 = arith.constant dense<0.000000e+00> : vector<8x384xf32>
    %18 = tpu.matmul %17, %11, %cst_16 {dimension_numbers = #tpu.dot_dimension_numbers<[1], [0], [0], [1], [0, 0, 1, 1], [], []>} : vector<8x128xbf16>, vector<128x384xbf16>, vector<8x384xf32> -> vector<8x384xf32>
    %19 = vector.broadcast %10 : vector<1x384xf32> to vector<8x384xf32>
    %20 = arith.addf %18, %19 : vector<8x384xf32>
    %21 = vector.extract_strided_slice %16 {offsets = [0, 0], sizes = [8, 128], strides = [1, 1]} : vector<8x384xf32> to vector<8x128xf32>
    %22 = vector.extract_strided_slice %20 {offsets = [0, 0], sizes = [8, 128], strides = [1, 1]} : vector<8x384xf32> to vector<8x128xf32>
    %23 = arith.addf %21, %22 : vector<8x128xf32>
    %24 = arith.negf %23 : vector<8x128xf32>
    %25 = math.exp %24 : vector<8x128xf32>
    %cst_17 = arith.constant 1.000000e+00 : f32
    %26 = vector.broadcast %cst_17 : f32 to vector<8x128xf32>
    %27 = arith.addf %26, %25 : vector<8x128xf32>
    %28 = arith.divf %26, %27 : vector<8x128xf32>
    %29 = vector.extract_strided_slice %16 {offsets = [0, 128], sizes = [8, 128], strides = [1, 1]} : vector<8x384xf32> to vector<8x128xf32>
    %30 = vector.extract_strided_slice %20 {offsets = [0, 128], sizes = [8, 128], strides = [1, 1]} : vector<8x384xf32> to vector<8x128xf32>
    %31 = arith.addf %29, %30 : vector<8x128xf32>
    %32 = arith.negf %31 : vector<8x128xf32>
    %33 = math.exp %32 : vector<8x128xf32>
    %cst_18 = arith.constant 1.000000e+00 : f32
    %34 = vector.broadcast %cst_18 : f32 to vector<8x128xf32>
    %35 = arith.addf %34, %33 : vector<8x128xf32>
    %36 = arith.divf %34, %35 : vector<8x128xf32>
    %37 = vector.extract_strided_slice %16 {offsets = [0, 256], sizes = [8, 128], strides = [1, 1]} : vector<8x384xf32> to vector<8x128xf32>
    %38 = vector.extract_strided_slice %20 {offsets = [0, 256], sizes = [8, 128], strides = [1, 1]} : vector<8x384xf32> to vector<8x128xf32>
    %39 = arith.mulf %28, %38 : vector<8x128xf32>
    %40 = arith.addf %37, %39 : vector<8x128xf32>
    %41 = math.tanh %40 : vector<8x128xf32>
    %cst_19 = arith.constant 1.000000e+00 : f32
    %42 = vector.broadcast %cst_19 : f32 to vector<8x128xf32>
    %43 = arith.subf %42, %36 : vector<8x128xf32>
    %44 = arith.mulf %43, %41 : vector<8x128xf32>
    %45 = arith.mulf %36, %12 : vector<8x128xf32>
    %46 = arith.addf %44, %45 : vector<8x128xf32>
    %47 = arith.index_cast %14 : i32 to index
    %c0_20 = arith.constant 0 : index
    %48 = vector.load %arg11[%47, %c0_20] : memref<64x128xf32, #tpu.memory_space<vmem>>, vector<8x128xf32>
    tpu.vector_store %arg11[%47, %c0_20], %46 {strides = array<i32>} : memref<64x128xf32, #tpu.memory_space<vmem>>, vector<8x128xf32>,
    %c0_21 = arith.constant 0 : index
    %c0_22 = arith.constant 0 : index
    %49 = vector.load %arg9[%c0_21, %c0_22] : memref<8x128xf32, #tpu.memory_space<vmem>>, vector<8x128xf32>
    tpu.vector_store %arg9[%c0_21, %c0_22], %46 {strides = array<i32>} : memref<8x128xf32, #tpu.memory_space<vmem>>, vector<8x128xf32>,
    %c1_i32 = arith.constant 1 : i32
    %c0_23 = arith.constant 0 : index
    %c0_24 = arith.constant 0 : index
    %50 = vector.load %arg9[%c0_23, %c0_24] : memref<8x128xf32, #tpu.memory_space<vmem>>, vector<8x128xf32>
    %c8_i32_25 = arith.constant 8 : i32
    %51 = arith.muli %c1_i32, %c8_i32_25 : i32
    %52 = tpu.assume_multiple %51, 8 : i32
    %53 = arith.index_cast %52 : i32 to index
    %c0_26 = arith.constant 0 : index
    %54 = vector.load %arg10[%53, %c0_26] : memref<64x384xf32, #tpu.memory_space<vmem>>, vector<8x384xf32>
    %55 = arith.truncf %50 : vector<8x128xf32> to vector<8x128xbf16>
    %cst_27 = arith.constant dense<0.000000e+00> : vector<8x384xf32>
    %56 = tpu.matmul %55, %11, %cst_27 {dimension_numbers = #tpu.dot_dimension_numbers<[1], [0], [0], [1], [0, 0, 1, 1], [], []>} : vector<8x128xbf16>, vector<128x384xbf16>, vector<8x384xf32> -> vector<8x384xf32>
    %57 = vector.broadcast %10 : vector<1x384xf32> to vector<8x384xf32>
    %58 = arith.addf %56, %57 : vector<8x384xf32>
    %59 = vector.extract_strided_slice %54 {offsets = [0, 0], sizes = [8, 128], strides = [1, 1]} : vector<8x384xf32> to vector<8x128xf32>
    %60 = vector.extract_strided_slice %58 {offsets = [0, 0], sizes = [8, 128], strides = [1, 1]} : vector<8x384xf32> to vector<8x128xf32>
    %61 = arith.addf %59, %60 : vector<8x128xf32>
    %62 = arith.negf %61 : vector<8x128xf32>
    %63 = math.exp %62 : vector<8x128xf32>
    %cst_28 = arith.constant 1.000000e+00 : f32
    %64 = vector.broadcast %cst_28 : f32 to vector<8x128xf32>
    %65 = arith.addf %64, %63 : vector<8x128xf32>
    %66 = arith.divf %64, %65 : vector<8x128xf32>
    %67 = vector.extract_strided_slice %54 {offsets = [0, 128], sizes = [8, 128], strides = [1, 1]} : vector<8x384xf32> to vector<8x128xf32>
    %68 = vector.extract_strided_slice %58 {offsets = [0, 128], sizes = [8, 128], strides = [1, 1]} : vector<8x384xf32> to vector<8x128xf32>
    %69 = arith.addf %67, %68 : vector<8x128xf32>
    %70 = arith.negf %69 : vector<8x128xf32>
    %71 = math.exp %70 : vector<8x128xf32>
    %cst_29 = arith.constant 1.000000e+00 : f32
    %72 = vector.broadcast %cst_29 : f32 to vector<8x128xf32>
    %73 = arith.addf %72, %71 : vector<8x128xf32>
    %74 = arith.divf %72, %73 : vector<8x128xf32>
    %75 = vector.extract_strided_slice %54 {offsets = [0, 256], sizes = [8, 128], strides = [1, 1]} : vector<8x384xf32> to vector<8x128xf32>
    %76 = vector.extract_strided_slice %58 {offsets = [0, 256], sizes = [8, 128], strides = [1, 1]} : vector<8x384xf32> to vector<8x128xf32>
    %77 = arith.mulf %66, %76 : vector<8x128xf32>
    %78 = arith.addf %75, %77 : vector<8x128xf32>
    %79 = math.tanh %78 : vector<8x128xf32>
    %cst_30 = arith.constant 1.000000e+00 : f32
    %80 = vector.broadcast %cst_30 : f32 to vector<8x128xf32>
    %81 = arith.subf %80, %74 : vector<8x128xf32>
    %82 = arith.mulf %81, %79 : vector<8x128xf32>
    %83 = arith.mulf %74, %50 : vector<8x128xf32>
    %84 = arith.addf %82, %83 : vector<8x128xf32>
    %85 = arith.index_cast %52 : i32 to index
    %c0_31 = arith.constant 0 : index
    %86 = vector.load %arg11[%85, %c0_31] : memref<64x128xf32, #tpu.memory_space<vmem>>, vector<8x128xf32>
    tpu.vector_store %arg11[%85, %c0_31], %84 {strides = array<i32>} : memref<64x128xf32, #tpu.memory_space<vmem>>, vector<8x128xf32>,
    %c0_32 = arith.constant 0 : index
    %c0_33 = arith.constant 0 : index
    %87 = vector.load %arg9[%c0_32, %c0_33] : memref<8x128xf32, #tpu.memory_space<vmem>>, vector<8x128xf32>
    tpu.vector_store %arg9[%c0_32, %c0_33], %84 {strides = array<i32>} : memref<8x128xf32, #tpu.memory_space<vmem>>, vector<8x128xf32>,
    %c2_i32 = arith.constant 2 : i32
    %c0_34 = arith.constant 0 : index
    %c0_35 = arith.constant 0 : index
    %88 = vector.load %arg9[%c0_34, %c0_35] : memref<8x128xf32, #tpu.memory_space<vmem>>, vector<8x128xf32>
    %c8_i32_36 = arith.constant 8 : i32
    %89 = arith.muli %c2_i32, %c8_i32_36 : i32
    %90 = tpu.assume_multiple %89, 8 : i32
    %91 = arith.index_cast %90 : i32 to index
    %c0_37 = arith.constant 0 : index
    %92 = vector.load %arg10[%91, %c0_37] : memref<64x384xf32, #tpu.memory_space<vmem>>, vector<8x384xf32>
    %93 = arith.truncf %88 : vector<8x128xf32> to vector<8x128xbf16>
    %cst_38 = arith.constant dense<0.000000e+00> : vector<8x384xf32>
    %94 = tpu.matmul %93, %11, %cst_38 {dimension_numbers = #tpu.dot_dimension_numbers<[1], [0], [0], [1], [0, 0, 1, 1], [], []>} : vector<8x128xbf16>, vector<128x384xbf16>, vector<8x384xf32> -> vector<8x384xf32>
    %95 = vector.broadcast %10 : vector<1x384xf32> to vector<8x384xf32>
    %96 = arith.addf %94, %95 : vector<8x384xf32>
    %97 = vector.extract_strided_slice %92 {offsets = [0, 0], sizes = [8, 128], strides = [1, 1]} : vector<8x384xf32> to vector<8x128xf32>
    %98 = vector.extract_strided_slice %96 {offsets = [0, 0], sizes = [8, 128], strides = [1, 1]} : vector<8x384xf32> to vector<8x128xf32>
    %99 = arith.addf %97, %98 : vector<8x128xf32>
    %100 = arith.negf %99 : vector<8x128xf32>
    %101 = math.exp %100 : vector<8x128xf32>
    %cst_39 = arith.constant 1.000000e+00 : f32
    %102 = vector.broadcast %cst_39 : f32 to vector<8x128xf32>
    %103 = arith.addf %102, %101 : vector<8x128xf32>
    %104 = arith.divf %102, %103 : vector<8x128xf32>
    %105 = vector.extract_strided_slice %92 {offsets = [0, 128], sizes = [8, 128], strides = [1, 1]} : vector<8x384xf32> to vector<8x128xf32>
    %106 = vector.extract_strided_slice %96 {offsets = [0, 128], sizes = [8, 128], strides = [1, 1]} : vector<8x384xf32> to vector<8x128xf32>
    %107 = arith.addf %105, %106 : vector<8x128xf32>
    %108 = arith.negf %107 : vector<8x128xf32>
    %109 = math.exp %108 : vector<8x128xf32>
    %cst_40 = arith.constant 1.000000e+00 : f32
    %110 = vector.broadcast %cst_40 : f32 to vector<8x128xf32>
    %111 = arith.addf %110, %109 : vector<8x128xf32>
    %112 = arith.divf %110, %111 : vector<8x128xf32>
    %113 = vector.extract_strided_slice %92 {offsets = [0, 256], sizes = [8, 128], strides = [1, 1]} : vector<8x384xf32> to vector<8x128xf32>
    %114 = vector.extract_strided_slice %96 {offsets = [0, 256], sizes = [8, 128], strides = [1, 1]} : vector<8x384xf32> to vector<8x128xf32>
    %115 = arith.mulf %104, %114 : vector<8x128xf32>
    %116 = arith.addf %113, %115 : vector<8x128xf32>
    %117 = math.tanh %116 : vector<8x128xf32>
    %cst_41 = arith.constant 1.000000e+00 : f32
    %118 = vector.broadcast %cst_41 : f32 to vector<8x128xf32>
    %119 = arith.subf %118, %112 : vector<8x128xf32>
    %120 = arith.mulf %119, %117 : vector<8x128xf32>
    %121 = arith.mulf %112, %88 : vector<8x128xf32>
    %122 = arith.addf %120, %121 : vector<8x128xf32>
    %123 = arith.index_cast %90 : i32 to index
    %c0_42 = arith.constant 0 : index
    %124 = vector.load %arg11[%123, %c0_42] : memref<64x128xf32, #tpu.memory_space<vmem>>, vector<8x128xf32>
    tpu.vector_store %arg11[%123, %c0_42], %122 {strides = array<i32>} : memref<64x128xf32, #tpu.memory_space<vmem>>, vector<8x128xf32>,
    %c0_43 = arith.constant 0 : index
    %c0_44 = arith.constant 0 : index
    %125 = vector.load %arg9[%c0_43, %c0_44] : memref<8x128xf32, #tpu.memory_space<vmem>>, vector<8x128xf32>
    tpu.vector_store %arg9[%c0_43, %c0_44], %122 {strides = array<i32>} : memref<8x128xf32, #tpu.memory_space<vmem>>, vector<8x128xf32>,
    %c3_i32 = arith.constant 3 : i32
    %c0_45 = arith.constant 0 : index
    %c0_46 = arith.constant 0 : index
    %126 = vector.load %arg9[%c0_45, %c0_46] : memref<8x128xf32, #tpu.memory_space<vmem>>, vector<8x128xf32>
    %c8_i32_47 = arith.constant 8 : i32
    %127 = arith.muli %c3_i32, %c8_i32_47 : i32
    %128 = tpu.assume_multiple %127, 8 : i32
    %129 = arith.index_cast %128 : i32 to index
    %c0_48 = arith.constant 0 : index
    %130 = vector.load %arg10[%129, %c0_48] : memref<64x384xf32, #tpu.memory_space<vmem>>, vector<8x384xf32>
    %131 = arith.truncf %126 : vector<8x128xf32> to vector<8x128xbf16>
    %cst_49 = arith.constant dense<0.000000e+00> : vector<8x384xf32>
    %132 = tpu.matmul %131, %11, %cst_49 {dimension_numbers = #tpu.dot_dimension_numbers<[1], [0], [0], [1], [0, 0, 1, 1], [], []>} : vector<8x128xbf16>, vector<128x384xbf16>, vector<8x384xf32> -> vector<8x384xf32>
    %133 = vector.broadcast %10 : vector<1x384xf32> to vector<8x384xf32>
    %134 = arith.addf %132, %133 : vector<8x384xf32>
    %135 = vector.extract_strided_slice %130 {offsets = [0, 0], sizes = [8, 128], strides = [1, 1]} : vector<8x384xf32> to vector<8x128xf32>
    %136 = vector.extract_strided_slice %134 {offsets = [0, 0], sizes = [8, 128], strides = [1, 1]} : vector<8x384xf32> to vector<8x128xf32>
    %137 = arith.addf %135, %136 : vector<8x128xf32>
    %138 = arith.negf %137 : vector<8x128xf32>
    %139 = math.exp %138 : vector<8x128xf32>
    %cst_50 = arith.constant 1.000000e+00 : f32
    %140 = vector.broadcast %cst_50 : f32 to vector<8x128xf32>
    %141 = arith.addf %140, %139 : vector<8x128xf32>
    %142 = arith.divf %140, %141 : vector<8x128xf32>
    %143 = vector.extract_strided_slice %130 {offsets = [0, 128], sizes = [8, 128], strides = [1, 1]} : vector<8x384xf32> to vector<8x128xf32>
    %144 = vector.extract_strided_slice %134 {offsets = [0, 128], sizes = [8, 128], strides = [1, 1]} : vector<8x384xf32> to vector<8x128xf32>
    %145 = arith.addf %143, %144 : vector<8x128xf32>
    %146 = arith.negf %145 : vector<8x128xf32>
    %147 = math.exp %146 : vector<8x128xf32>
    %cst_51 = arith.constant 1.000000e+00 : f32
    %148 = vector.broadcast %cst_51 : f32 to vector<8x128xf32>
    %149 = arith.addf %148, %147 : vector<8x128xf32>
    %150 = arith.divf %148, %149 : vector<8x128xf32>
    %151 = vector.extract_strided_slice %130 {offsets = [0, 256], sizes = [8, 128], strides = [1, 1]} : vector<8x384xf32> to vector<8x128xf32>
    %152 = vector.extract_strided_slice %134 {offsets = [0, 256], sizes = [8, 128], strides = [1, 1]} : vector<8x384xf32> to vector<8x128xf32>
    %153 = arith.mulf %142, %152 : vector<8x128xf32>
    %154 = arith.addf %151, %153 : vector<8x128xf32>
    %155 = math.tanh %154 : vector<8x128xf32>
    %cst_52 = arith.constant 1.000000e+00 : f32
    %156 = vector.broadcast %cst_52 : f32 to vector<8x128xf32>
    %157 = arith.subf %156, %150 : vector<8x128xf32>
    %158 = arith.mulf %157, %155 : vector<8x128xf32>
    %159 = arith.mulf %150, %126 : vector<8x128xf32>
    %160 = arith.addf %158, %159 : vector<8x128xf32>
    %161 = arith.index_cast %128 : i32 to index
    %c0_53 = arith.constant 0 : index
    %162 = vector.load %arg11[%161, %c0_53] : memref<64x128xf32, #tpu.memory_space<vmem>>, vector<8x128xf32>
    tpu.vector_store %arg11[%161, %c0_53], %160 {strides = array<i32>} : memref<64x128xf32, #tpu.memory_space<vmem>>, vector<8x128xf32>,
    %c0_54 = arith.constant 0 : index
    %c0_55 = arith.constant 0 : index
    %163 = vector.load %arg9[%c0_54, %c0_55] : memref<8x128xf32, #tpu.memory_space<vmem>>, vector<8x128xf32>
    tpu.vector_store %arg9[%c0_54, %c0_55], %160 {strides = array<i32>} : memref<8x128xf32, #tpu.memory_space<vmem>>, vector<8x128xf32>,
    %c4_i32 = arith.constant 4 : i32
    %c0_56 = arith.constant 0 : index
    %c0_57 = arith.constant 0 : index
    %164 = vector.load %arg9[%c0_56, %c0_57] : memref<8x128xf32, #tpu.memory_space<vmem>>, vector<8x128xf32>
    %c8_i32_58 = arith.constant 8 : i32
    %165 = arith.muli %c4_i32, %c8_i32_58 : i32
    %166 = tpu.assume_multiple %165, 8 : i32
    %167 = arith.index_cast %166 : i32 to index
    %c0_59 = arith.constant 0 : index
    %168 = vector.load %arg10[%167, %c0_59] : memref<64x384xf32, #tpu.memory_space<vmem>>, vector<8x384xf32>
    %169 = arith.truncf %164 : vector<8x128xf32> to vector<8x128xbf16>
    %cst_60 = arith.constant dense<0.000000e+00> : vector<8x384xf32>
    %170 = tpu.matmul %169, %11, %cst_60 {dimension_numbers = #tpu.dot_dimension_numbers<[1], [0], [0], [1], [0, 0, 1, 1], [], []>} : vector<8x128xbf16>, vector<128x384xbf16>, vector<8x384xf32> -> vector<8x384xf32>
    %171 = vector.broadcast %10 : vector<1x384xf32> to vector<8x384xf32>
    %172 = arith.addf %170, %171 : vector<8x384xf32>
    %173 = vector.extract_strided_slice %168 {offsets = [0, 0], sizes = [8, 128], strides = [1, 1]} : vector<8x384xf32> to vector<8x128xf32>
    %174 = vector.extract_strided_slice %172 {offsets = [0, 0], sizes = [8, 128], strides = [1, 1]} : vector<8x384xf32> to vector<8x128xf32>
    %175 = arith.addf %173, %174 : vector<8x128xf32>
    %176 = arith.negf %175 : vector<8x128xf32>
    %177 = math.exp %176 : vector<8x128xf32>
    %cst_61 = arith.constant 1.000000e+00 : f32
    %178 = vector.broadcast %cst_61 : f32 to vector<8x128xf32>
    %179 = arith.addf %178, %177 : vector<8x128xf32>
    %180 = arith.divf %178, %179 : vector<8x128xf32>
    %181 = vector.extract_strided_slice %168 {offsets = [0, 128], sizes = [8, 128], strides = [1, 1]} : vector<8x384xf32> to vector<8x128xf32>
    %182 = vector.extract_strided_slice %172 {offsets = [0, 128], sizes = [8, 128], strides = [1, 1]} : vector<8x384xf32> to vector<8x128xf32>
    %183 = arith.addf %181, %182 : vector<8x128xf32>
    %184 = arith.negf %183 : vector<8x128xf32>
    %185 = math.exp %184 : vector<8x128xf32>
    %cst_62 = arith.constant 1.000000e+00 : f32
    %186 = vector.broadcast %cst_62 : f32 to vector<8x128xf32>
    %187 = arith.addf %186, %185 : vector<8x128xf32>
    %188 = arith.divf %186, %187 : vector<8x128xf32>
    %189 = vector.extract_strided_slice %168 {offsets = [0, 256], sizes = [8, 128], strides = [1, 1]} : vector<8x384xf32> to vector<8x128xf32>
    %190 = vector.extract_strided_slice %172 {offsets = [0, 256], sizes = [8, 128], strides = [1, 1]} : vector<8x384xf32> to vector<8x128xf32>
    %191 = arith.mulf %180, %190 : vector<8x128xf32>
    %192 = arith.addf %189, %191 : vector<8x128xf32>
    %193 = math.tanh %192 : vector<8x128xf32>
    %cst_63 = arith.constant 1.000000e+00 : f32
    %194 = vector.broadcast %cst_63 : f32 to vector<8x128xf32>
    %195 = arith.subf %194, %188 : vector<8x128xf32>
    %196 = arith.mulf %195, %193 : vector<8x128xf32>
    %197 = arith.mulf %188, %164 : vector<8x128xf32>
    %198 = arith.addf %196, %197 : vector<8x128xf32>
    %199 = arith.index_cast %166 : i32 to index
    %c0_64 = arith.constant 0 : index
    %200 = vector.load %arg11[%199, %c0_64] : memref<64x128xf32, #tpu.memory_space<vmem>>, vector<8x128xf32>
    tpu.vector_store %arg11[%199, %c0_64], %198 {strides = array<i32>} : memref<64x128xf32, #tpu.memory_space<vmem>>, vector<8x128xf32>,
    %c0_65 = arith.constant 0 : index
    %c0_66 = arith.constant 0 : index
    %201 = vector.load %arg9[%c0_65, %c0_66] : memref<8x128xf32, #tpu.memory_space<vmem>>, vector<8x128xf32>
    tpu.vector_store %arg9[%c0_65, %c0_66], %198 {strides = array<i32>} : memref<8x128xf32, #tpu.memory_space<vmem>>, vector<8x128xf32>,
    %c5_i32 = arith.constant 5 : i32
    %c0_67 = arith.constant 0 : index
    %c0_68 = arith.constant 0 : index
    %202 = vector.load %arg9[%c0_67, %c0_68] : memref<8x128xf32, #tpu.memory_space<vmem>>, vector<8x128xf32>
    %c8_i32_69 = arith.constant 8 : i32
    %203 = arith.muli %c5_i32, %c8_i32_69 : i32
    %204 = tpu.assume_multiple %203, 8 : i32
    %205 = arith.index_cast %204 : i32 to index
    %c0_70 = arith.constant 0 : index
    %206 = vector.load %arg10[%205, %c0_70] : memref<64x384xf32, #tpu.memory_space<vmem>>, vector<8x384xf32>
    %207 = arith.truncf %202 : vector<8x128xf32> to vector<8x128xbf16>
    %cst_71 = arith.constant dense<0.000000e+00> : vector<8x384xf32>
    %208 = tpu.matmul %207, %11, %cst_71 {dimension_numbers = #tpu.dot_dimension_numbers<[1], [0], [0], [1], [0, 0, 1, 1], [], []>} : vector<8x128xbf16>, vector<128x384xbf16>, vector<8x384xf32> -> vector<8x384xf32>
    %209 = vector.broadcast %10 : vector<1x384xf32> to vector<8x384xf32>
    %210 = arith.addf %208, %209 : vector<8x384xf32>
    %211 = vector.extract_strided_slice %206 {offsets = [0, 0], sizes = [8, 128], strides = [1, 1]} : vector<8x384xf32> to vector<8x128xf32>
    %212 = vector.extract_strided_slice %210 {offsets = [0, 0], sizes = [8, 128], strides = [1, 1]} : vector<8x384xf32> to vector<8x128xf32>
    %213 = arith.addf %211, %212 : vector<8x128xf32>
    %214 = arith.negf %213 : vector<8x128xf32>
    %215 = math.exp %214 : vector<8x128xf32>
    %cst_72 = arith.constant 1.000000e+00 : f32
    %216 = vector.broadcast %cst_72 : f32 to vector<8x128xf32>
    %217 = arith.addf %216, %215 : vector<8x128xf32>
    %218 = arith.divf %216, %217 : vector<8x128xf32>
    %219 = vector.extract_strided_slice %206 {offsets = [0, 128], sizes = [8, 128], strides = [1, 1]} : vector<8x384xf32> to vector<8x128xf32>
    %220 = vector.extract_strided_slice %210 {offsets = [0, 128], sizes = [8, 128], strides = [1, 1]} : vector<8x384xf32> to vector<8x128xf32>
    %221 = arith.addf %219, %220 : vector<8x128xf32>
    %222 = arith.negf %221 : vector<8x128xf32>
    %223 = math.exp %222 : vector<8x128xf32>
    %cst_73 = arith.constant 1.000000e+00 : f32
    %224 = vector.broadcast %cst_73 : f32 to vector<8x128xf32>
    %225 = arith.addf %224, %223 : vector<8x128xf32>
    %226 = arith.divf %224, %225 : vector<8x128xf32>
    %227 = vector.extract_strided_slice %206 {offsets = [0, 256], sizes = [8, 128], strides = [1, 1]} : vector<8x384xf32> to vector<8x128xf32>
    %228 = vector.extract_strided_slice %210 {offsets = [0, 256], sizes = [8, 128], strides = [1, 1]} : vector<8x384xf32> to vector<8x128xf32>
    %229 = arith.mulf %218, %228 : vector<8x128xf32>
    %230 = arith.addf %227, %229 : vector<8x128xf32>
    %231 = math.tanh %230 : vector<8x128xf32>
    %cst_74 = arith.constant 1.000000e+00 : f32
    %232 = vector.broadcast %cst_74 : f32 to vector<8x128xf32>
    %233 = arith.subf %232, %226 : vector<8x128xf32>
    %234 = arith.mulf %233, %231 : vector<8x128xf32>
    %235 = arith.mulf %226, %202 : vector<8x128xf32>
    %236 = arith.addf %234, %235 : vector<8x128xf32>
    %237 = arith.index_cast %204 : i32 to index
    %c0_75 = arith.constant 0 : index
    %238 = vector.load %arg11[%237, %c0_75] : memref<64x128xf32, #tpu.memory_space<vmem>>, vector<8x128xf32>
    tpu.vector_store %arg11[%237, %c0_75], %236 {strides = array<i32>} : memref<64x128xf32, #tpu.memory_space<vmem>>, vector<8x128xf32>,
    %c0_76 = arith.constant 0 : index
    %c0_77 = arith.constant 0 : index
    %239 = vector.load %arg9[%c0_76, %c0_77] : memref<8x128xf32, #tpu.memory_space<vmem>>, vector<8x128xf32>
    tpu.vector_store %arg9[%c0_76, %c0_77], %236 {strides = array<i32>} : memref<8x128xf32, #tpu.memory_space<vmem>>, vector<8x128xf32>,
    %c6_i32 = arith.constant 6 : i32
    %c0_78 = arith.constant 0 : index
    %c0_79 = arith.constant 0 : index
    %240 = vector.load %arg9[%c0_78, %c0_79] : memref<8x128xf32, #tpu.memory_space<vmem>>, vector<8x128xf32>
    %c8_i32_80 = arith.constant 8 : i32
    %241 = arith.muli %c6_i32, %c8_i32_80 : i32
    %242 = tpu.assume_multiple %241, 8 : i32
    %243 = arith.index_cast %242 : i32 to index
    %c0_81 = arith.constant 0 : index
    %244 = vector.load %arg10[%243, %c0_81] : memref<64x384xf32, #tpu.memory_space<vmem>>, vector<8x384xf32>
    %245 = arith.truncf %240 : vector<8x128xf32> to vector<8x128xbf16>
    %cst_82 = arith.constant dense<0.000000e+00> : vector<8x384xf32>
    %246 = tpu.matmul %245, %11, %cst_82 {dimension_numbers = #tpu.dot_dimension_numbers<[1], [0], [0], [1], [0, 0, 1, 1], [], []>} : vector<8x128xbf16>, vector<128x384xbf16>, vector<8x384xf32> -> vector<8x384xf32>
    %247 = vector.broadcast %10 : vector<1x384xf32> to vector<8x384xf32>
    %248 = arith.addf %246, %247 : vector<8x384xf32>
    %249 = vector.extract_strided_slice %244 {offsets = [0, 0], sizes = [8, 128], strides = [1, 1]} : vector<8x384xf32> to vector<8x128xf32>
    %250 = vector.extract_strided_slice %248 {offsets = [0, 0], sizes = [8, 128], strides = [1, 1]} : vector<8x384xf32> to vector<8x128xf32>
    %251 = arith.addf %249, %250 : vector<8x128xf32>
    %252 = arith.negf %251 : vector<8x128xf32>
    %253 = math.exp %252 : vector<8x128xf32>
    %cst_83 = arith.constant 1.000000e+00 : f32
    %254 = vector.broadcast %cst_83 : f32 to vector<8x128xf32>
    %255 = arith.addf %254, %253 : vector<8x128xf32>
    %256 = arith.divf %254, %255 : vector<8x128xf32>
    %257 = vector.extract_strided_slice %244 {offsets = [0, 128], sizes = [8, 128], strides = [1, 1]} : vector<8x384xf32> to vector<8x128xf32>
    %258 = vector.extract_strided_slice %248 {offsets = [0, 128], sizes = [8, 128], strides = [1, 1]} : vector<8x384xf32> to vector<8x128xf32>
    %259 = arith.addf %257, %258 : vector<8x128xf32>
    %260 = arith.negf %259 : vector<8x128xf32>
    %261 = math.exp %260 : vector<8x128xf32>
    %cst_84 = arith.constant 1.000000e+00 : f32
    %262 = vector.broadcast %cst_84 : f32 to vector<8x128xf32>
    %263 = arith.addf %262, %261 : vector<8x128xf32>
    %264 = arith.divf %262, %263 : vector<8x128xf32>
    %265 = vector.extract_strided_slice %244 {offsets = [0, 256], sizes = [8, 128], strides = [1, 1]} : vector<8x384xf32> to vector<8x128xf32>
    %266 = vector.extract_strided_slice %248 {offsets = [0, 256], sizes = [8, 128], strides = [1, 1]} : vector<8x384xf32> to vector<8x128xf32>
    %267 = arith.mulf %256, %266 : vector<8x128xf32>
    %268 = arith.addf %265, %267 : vector<8x128xf32>
    %269 = math.tanh %268 : vector<8x128xf32>
    %cst_85 = arith.constant 1.000000e+00 : f32
    %270 = vector.broadcast %cst_85 : f32 to vector<8x128xf32>
    %271 = arith.subf %270, %264 : vector<8x128xf32>
    %272 = arith.mulf %271, %269 : vector<8x128xf32>
    %273 = arith.mulf %264, %240 : vector<8x128xf32>
    %274 = arith.addf %272, %273 : vector<8x128xf32>
    %275 = arith.index_cast %242 : i32 to index
    %c0_86 = arith.constant 0 : index
    %276 = vector.load %arg11[%275, %c0_86] : memref<64x128xf32, #tpu.memory_space<vmem>>, vector<8x128xf32>
    tpu.vector_store %arg11[%275, %c0_86], %274 {strides = array<i32>} : memref<64x128xf32, #tpu.memory_space<vmem>>, vector<8x128xf32>,
    %c0_87 = arith.constant 0 : index
    %c0_88 = arith.constant 0 : index
    %277 = vector.load %arg9[%c0_87, %c0_88] : memref<8x128xf32, #tpu.memory_space<vmem>>, vector<8x128xf32>
    tpu.vector_store %arg9[%c0_87, %c0_88], %274 {strides = array<i32>} : memref<8x128xf32, #tpu.memory_space<vmem>>, vector<8x128xf32>,
    %c7_i32 = arith.constant 7 : i32
    %c0_89 = arith.constant 0 : index
    %c0_90 = arith.constant 0 : index
    %278 = vector.load %arg9[%c0_89, %c0_90] : memref<8x128xf32, #tpu.memory_space<vmem>>, vector<8x128xf32>
    %c8_i32_91 = arith.constant 8 : i32
    %279 = arith.muli %c7_i32, %c8_i32_91 : i32
    %280 = tpu.assume_multiple %279, 8 : i32
    %281 = arith.index_cast %280 : i32 to index
    %c0_92 = arith.constant 0 : index
    %282 = vector.load %arg10[%281, %c0_92] : memref<64x384xf32, #tpu.memory_space<vmem>>, vector<8x384xf32>
    %283 = arith.truncf %278 : vector<8x128xf32> to vector<8x128xbf16>
    %cst_93 = arith.constant dense<0.000000e+00> : vector<8x384xf32>
    %284 = tpu.matmul %283, %11, %cst_93 {dimension_numbers = #tpu.dot_dimension_numbers<[1], [0], [0], [1], [0, 0, 1, 1], [], []>} : vector<8x128xbf16>, vector<128x384xbf16>, vector<8x384xf32> -> vector<8x384xf32>
    %285 = vector.broadcast %10 : vector<1x384xf32> to vector<8x384xf32>
    %286 = arith.addf %284, %285 : vector<8x384xf32>
    %287 = vector.extract_strided_slice %282 {offsets = [0, 0], sizes = [8, 128], strides = [1, 1]} : vector<8x384xf32> to vector<8x128xf32>
    %288 = vector.extract_strided_slice %286 {offsets = [0, 0], sizes = [8, 128], strides = [1, 1]} : vector<8x384xf32> to vector<8x128xf32>
    %289 = arith.addf %287, %288 : vector<8x128xf32>
    %290 = arith.negf %289 : vector<8x128xf32>
    %291 = math.exp %290 : vector<8x128xf32>
    %cst_94 = arith.constant 1.000000e+00 : f32
    %292 = vector.broadcast %cst_94 : f32 to vector<8x128xf32>
    %293 = arith.addf %292, %291 : vector<8x128xf32>
    %294 = arith.divf %292, %293 : vector<8x128xf32>
    %295 = vector.extract_strided_slice %282 {offsets = [0, 128], sizes = [8, 128], strides = [1, 1]} : vector<8x384xf32> to vector<8x128xf32>
    %296 = vector.extract_strided_slice %286 {offsets = [0, 128], sizes = [8, 128], strides = [1, 1]} : vector<8x384xf32> to vector<8x128xf32>
    %297 = arith.addf %295, %296 : vector<8x128xf32>
    %298 = arith.negf %297 : vector<8x128xf32>
    %299 = math.exp %298 : vector<8x128xf32>
    %cst_95 = arith.constant 1.000000e+00 : f32
    %300 = vector.broadcast %cst_95 : f32 to vector<8x128xf32>
    %301 = arith.addf %300, %299 : vector<8x128xf32>
    %302 = arith.divf %300, %301 : vector<8x128xf32>
    %303 = vector.extract_strided_slice %282 {offsets = [0, 256], sizes = [8, 128], strides = [1, 1]} : vector<8x384xf32> to vector<8x128xf32>
    %304 = vector.extract_strided_slice %286 {offsets = [0, 256], sizes = [8, 128], strides = [1, 1]} : vector<8x384xf32> to vector<8x128xf32>
    %305 = arith.mulf %294, %304 : vector<8x128xf32>
    %306 = arith.addf %303, %305 : vector<8x128xf32>
    %307 = math.tanh %306 : vector<8x128xf32>
    %cst_96 = arith.constant 1.000000e+00 : f32
    %308 = vector.broadcast %cst_96 : f32 to vector<8x128xf32>
    %309 = arith.subf %308, %302 : vector<8x128xf32>
    %310 = arith.mulf %309, %307 : vector<8x128xf32>
    %311 = arith.mulf %302, %278 : vector<8x128xf32>
    %312 = arith.addf %310, %311 : vector<8x128xf32>
    %313 = arith.index_cast %280 : i32 to index
    %c0_97 = arith.constant 0 : index
    %314 = vector.load %arg11[%313, %c0_97] : memref<64x128xf32, #tpu.memory_space<vmem>>, vector<8x128xf32>
    tpu.vector_store %arg11[%313, %c0_97], %312 {strides = array<i32>} : memref<64x128xf32, #tpu.memory_space<vmem>>, vector<8x128xf32>,
    %c0_98 = arith.constant 0 : index
    %c0_99 = arith.constant 0 : index
    %315 = vector.load %arg9[%c0_98, %c0_99] : memref<8x128xf32, #tpu.memory_space<vmem>>, vector<8x128xf32>
    tpu.vector_store %arg9[%c0_98, %c0_99], %312 {strides = array<i32>} : memref<8x128xf32, #tpu.memory_space<vmem>>, vector<8x128xf32>,
    %c8_i32_100 = arith.constant 8 : i32
    %c0_101 = arith.constant 0 : index
    %c0_102 = arith.constant 0 : index
    %316 = vector.load %arg11[%c0_101, %c0_102] : memref<64x128xf32, #tpu.memory_space<vmem>>, vector<64x128xf32>
    %317 = arith.truncf %316 : vector<64x128xf32> to vector<64x128xbf16>
    %c0_103 = arith.constant 0 : index
    %c0_104 = arith.constant 0 : index
    %318 = vector.load %arg7[%c0_103, %c0_104] : memref<64x128xbf16, #tpu.memory_space<vmem>>, vector<64x128xbf16>
    tpu.vector_store %arg7[%c0_103, %c0_104], %317 {strides = array<i32>} : memref<64x128xbf16, #tpu.memory_space<vmem>>, vector<64x128xbf16>,
    %c0_i32_105 = arith.constant 0 : i32
    %319 = arith.cmpi eq, %arg0, %c0_i32_105 : i32
    %320 = arith.extui %319 : i1 to i32
    %c0_i32_106 = arith.constant 0 : i32
    %321 = arith.cmpi ne, %320, %c0_i32_106 : i32
    scf.if %321 {
      %c0_107 = arith.constant 0 : index
      %c0_108 = arith.constant 0 : index
      %322 = vector.load %arg9[%c0_107, %c0_108] : memref<8x128xf32, #tpu.memory_space<vmem>>, vector<8x128xf32>
      %c0_109 = arith.constant 0 : index
      %c0_110 = arith.constant 0 : index
      %323 = vector.load %arg8[%c0_109, %c0_110] : memref<8x128xf32, #tpu.memory_space<vmem>>, vector<8x128xf32>
      tpu.vector_store %arg8[%c0_109, %c0_110], %322 {strides = array<i32>} : memref<8x128xf32, #tpu.memory_space<vmem>>, vector<8x128xf32>,
    } else {
    }
    return
  }
  func.func @transform_0(%arg0: i32) -> (i32, i32) {
    %c0_i32 = arith.constant 0 : i32
    %c0_i32_0 = arith.constant 0 : i32
    return %arg0, %c0_i32 : i32, i32
  }
  func.func @transform_1(%arg0: i32) -> (i32, i32) {
    %c0_i32 = arith.constant 0 : i32
    %c0_i32_0 = arith.constant 0 : i32
    %c0_i32_1 = arith.constant 0 : i32
    return %c0_i32, %c0_i32_0 : i32, i32
  }
  func.func @transform_2(%arg0: i32) -> (i32, i32) {
    %c0_i32 = arith.constant 0 : i32
    %c0_i32_0 = arith.constant 0 : i32
    %c0_i32_1 = arith.constant 0 : i32
    return %c0_i32, %c0_i32_0 : i32, i32
  }
  func.func @transform_3(%arg0: i32) -> (i32, i32) {
    %c0_i32 = arith.constant 0 : i32
    %c0_i32_0 = arith.constant 0 : i32
    %c0_i32_1 = arith.constant 0 : i32
    return %c0_i32, %c0_i32_0 : i32, i32
  }
  func.func @transform_4(%arg0: i32) -> (i32, i32) {
    %c0_i32 = arith.constant 0 : i32
    %c0_i32_0 = arith.constant 0 : i32
    %c0_i32_1 = arith.constant 0 : i32
    return %c0_i32, %c0_i32_0 : i32, i32
  }
  func.func @transform_5(%arg0: i32) -> (i32, i32) {
    %c0_i32 = arith.constant 0 : i32
    %c0_i32_0 = arith.constant 0 : i32
    %c0_i32_1 = arith.constant 0 : i32
    return %c0_i32, %c0_i32_0 : i32, i32
  }
  func.func @transform_6(%arg0: i32) -> (i32, i32) {
    %c0_i32 = arith.constant 0 : i32
    %c0_i32_0 = arith.constant 0 : i32
    return %arg0, %c0_i32 : i32, i32
  }
  func.func @transform_7(%arg0: i32) -> (i32, i32) {
    %c0_i32 = arith.constant 0 : i32
    %c0_i32_0 = arith.constant 0 : i32
    %c0_i32_1 = arith.constant 0 : i32
    return %c0_i32, %c0_i32_0 : i32, i32
  }
}

</mosaic_0001>

<llo_original>
// kernel: tpu_custom_call.1
$region0: #{tpu_custom_call.1}
  #allocation0 [shape = 'u32[]', space=smem, size = 0x4, offset = 0x4, fixed_abs, tag = 'smem constant byte address 0x4 - core index']
  #allocation1 [shape = 'u32[144,128]{1,0:T(1,128)}', space=vmem, size = 0x12000, scoped, tag = 'internal scratch']
  #allocation2 [shape = 'f32[8,128]{1,0:T(8,128)}', space=vmem, size = 0x1000, scoped, tag = 'scratch operand']
  #allocation3 [shape = 'f32[64,384]{1,0:T(8,128)}', space=vmem, size = 0x18000, scoped, tag = 'scratch operand']
  #allocation4 [shape = 'f32[64,128]{1,0:T(8,128)}', space=vmem, size = 0x8000, scoped, tag = 'scratch operand']
  %s0 = inlined_call_operand.hbm [shape: bf16[64,128], index: 0, kind: input, shape index: {}]
  %s1 = inlined_call_operand.hbm [shape: f32[8,128], index: 1, kind: input, shape index: {}]
  %s2 = inlined_call_operand.hbm [shape: bf16[128,384], index: 2, kind: input, shape index: {}]
  %s3 = inlined_call_operand.vmem [shape: f32[1,384], index: 3, kind: input, shape index: {}]
  %s4 = inlined_call_operand.hbm [shape: bf16[128,384], index: 4, kind: input, shape index: {}]
  %s5 = inlined_call_operand.vmem [shape: f32[1,384], index: 5, kind: input, shape index: {}]
  %s6 = inlined_call_operand.hbm [shape: bf16[64,128], index: 6, kind: output, shape index: {0}]
  %s7 = inlined_call_operand.hbm [shape: f32[8,128], index: 7, kind: output, shape index: {1}]
  %8 = xla_tuple %s6, %s7
  %s9 = sld [smem:[#allocation0]]
  $region66: #{tpu_custom_call.1} parent=0
    _
  %s11 = ssub.s32 1, %s9
  %s12 = scalar_select 0, %s11, %s9
  $region1: #{tpu_custom_call.1} parent=0
    #allocation5 [shape = 'u8[16384]{0}', space=vmem, size = 0x4000, scoped, tag = 'input window, operand 0, single buffered']
    #allocation6 [shape = 's32[1]{0}', space=sflag, size = 0x4, scoped, tag = 'scoped memory for tpu_custom_call.1']
    #allocation7 [shape = 's32[1]{0}', space=sflag, size = 0x4, scoped, tag = 'scoped memory for tpu_custom_call.1']
    #allocation8 [shape = 'u8[4096]{0}', space=vmem, size = 0x1000, scoped, tag = 'input window, operand 1, single buffered']
    #allocation9 [shape = 's32[1]{0}', space=sflag, size = 0x4, scoped, tag = 'scoped memory for tpu_custom_call.1']
    #allocation10 [shape = 'u8[98304]{0}', space=vmem, size = 0x18000, scoped, tag = 'input window, operand 2, single buffered']
    #allocation11 [shape = 'u8[98304]{0}', space=vmem, size = 0x18000, scoped, tag = 'input window, operand 4, single buffered']
    #allocation12 [shape = 's32[1]{0}', space=sflag, size = 0x4, scoped, tag = 'scoped memory for tpu_custom_call.1']
    #allocation13 [shape = 'u8[16384]{0}', space=vmem, size = 0x4000, scoped, tag = 'output window, operand 0, single buffered']
    #allocation14 [shape = 'u8[4096]{0}', space=vmem, size = 0x1000, scoped, tag = 'output window, operand 1, single buffered']
    #allocation15 [shape = 's32[1]{0}', space=sflag, size = 0x4, scoped, tag = 'scoped memory for tpu_custom_call.1']
    %13 = vsyncpa [#allocation6], 0
    %14 = vsyncpa [#allocation9], 0
    %15 = vsyncpa [#allocation12], 0
    %16 = vsyncpa [#allocation7], 0
    %17 = vsyncpa [#allocation15], 0
    // Predicated region
    $region2: #{tpu_custom_call.1} parent=1 // pred_check
      _
    $region3: #{tpu_custom_call.1} parent=1 // pred_check_branch
      %19 = sbr.rel (0) target = $region5
    $region4: #{tpu_custom_call.1} parent=1 // pred_region
      %s21 = ssub.s32 512, 512
      %22 = vsyncadd [#allocation6], %s21
      %s23 = sshll.u32 [#allocation5], 4
      %s24 = int_to_ptr.vmem [resolvable:$true] %s23
      %29 = dma.hbm_to_vmem [thread:$0]  %s0, 512, %s24, [#allocation6], 64, 64, 4
    $region5: #{tpu_custom_call.1} parent=1 // pred_fallthru
      _
    // Predicated region
    $region6: #{tpu_custom_call.1} parent=1 // pred_check
      _
    $region7: #{tpu_custom_call.1} parent=1 // pred_check_branch
      %31 = sbr.rel (0) target = $region9
    $region8: #{tpu_custom_call.1} parent=1 // pred_region
      %s33 = ssub.s32 128, 128
      %34 = vsyncadd [#allocation9], %s33
      %s36 = sshll.u32 [#allocation8], 4
      %s37 = int_to_ptr.vmem [resolvable:$true] %s36
      %39 = dma.hbm_to_vmem [thread:$0]  %s1, 128, %s37, [#allocation9]
    $region9: #{tpu_custom_call.1} parent=1 // pred_fallthru
      _
    // Predicated region
    $region10: #{tpu_custom_call.1} parent=1 // pred_check
      _
    $region11: #{tpu_custom_call.1} parent=1 // pred_check_branch
      %41 = sbr.rel (0) target = $region13
    $region12: #{tpu_custom_call.1} parent=1 // pred_region
      %s43 = ssub.s32 3072, 3072
      %44 = vsyncadd [#allocation9], %s43
      %s45 = sshll.u32 [#allocation10], 4
      %s46 = int_to_ptr.vmem [resolvable:$true] %s45
      %51 = dma.hbm_to_vmem [thread:$0]  %s2, 3072, %s46, [#allocation9], 192, 192, 12
    $region13: #{tpu_custom_call.1} parent=1 // pred_fallthru
      _
    // Predicated region
    $region14: #{tpu_custom_call.1} parent=1 // pred_check
      _
    $region15: #{tpu_custom_call.1} parent=1 // pred_check_branch
      %53 = sbr.rel (0) target = $region17
    $region16: #{tpu_custom_call.1} parent=1 // pred_region
      _
    $region17: #{tpu_custom_call.1} parent=1 // pred_fallthru
      _
    // Predicated region
    $region18: #{tpu_custom_call.1} parent=1 // pred_check
      _
    $region19: #{tpu_custom_call.1} parent=1 // pred_check_branch
      %55 = sbr.rel (0) target = $region21
    $region20: #{tpu_custom_call.1} parent=1 // pred_region
      %s57 = ssub.s32 3072, 3072
      %58 = vsyncadd [#allocation12], %s57
      %s59 = sshll.u32 [#allocation11], 4
      %s60 = int_to_ptr.vmem [resolvable:$true] %s59
      %65 = dma.hbm_to_vmem [thread:$0]  %s4, 3072, %s60, [#allocation12], 192, 192, 12
    $region21: #{tpu_custom_call.1} parent=1 // pred_fallthru
      _
    // Predicated region
    $region22: #{tpu_custom_call.1} parent=1 // pred_check
      _
    $region23: #{tpu_custom_call.1} parent=1 // pred_check_branch
      %67 = sbr.rel (0) target = $region25
    $region24: #{tpu_custom_call.1} parent=1 // pred_region
      _
    $region25: #{tpu_custom_call.1} parent=1 // pred_fallthru
      _
    // Predicated region
    $region26: #{tpu_custom_call.1} parent=1 // pred_check
      _
    $region27: #{tpu_custom_call.1} parent=1 // pred_check_branch
      %69 = sbr.rel (0) target = $region29
    $region28: #{tpu_custom_call.1} parent=1 // pred_region
      %70 = dma.done [#allocation6], 512
    $region29: #{tpu_custom_call.1} parent=1 // pred_fallthru
      _
    // Predicated region
    $region30: #{tpu_custom_call.1} parent=1 // pred_check
      _
    $region31: #{tpu_custom_call.1} parent=1 // pred_check_branch
      %72 = sbr.rel (0) target = $region33
    $region32: #{tpu_custom_call.1} parent=1 // pred_region
      %73 = dma.done [#allocation9], 128
    $region33: #{tpu_custom_call.1} parent=1 // pred_fallthru
      _
    // Predicated region
    $region34: #{tpu_custom_call.1} parent=1 // pred_check
      _
    $region35: #{tpu_custom_call.1} parent=1 // pred_check_branch
      %75 = sbr.rel (0) target = $region37
    $region36: #{tpu_custom_call.1} parent=1 // pred_region
      %76 = dma.done [#allocation9], 3072
    $region37: #{tpu_custom_call.1} parent=1 // pred_fallthru
      _
    // Predicated region
    $region38: #{tpu_custom_call.1} parent=1 // pred_check
      _
    $region39: #{tpu_custom_call.1} parent=1 // pred_check_branch
      %78 = sbr.rel (0) target = $region41
    $region40: #{tpu_custom_call.1} parent=1 // pred_region
      %79 = dma.done [#allocation12], 3072
    $region41: #{tpu_custom_call.1} parent=1 // pred_fallthru
      _
    %p81 = scmp.eq.s32.totalorder 0, 0
    // Predicated region
    $region42: #{tpu_custom_call.1} parent=1 // pred_check
      %p82 = pneg %p81
    $region43: #{tpu_custom_call.1} parent=1 // pred_check_branch
      %84 = sbr.rel (%p82) target = $region45
    $region44: #{tpu_custom_call.1} parent=1 // pred_region
      %v85 = vld [vmem:[#allocation8] sm:$0xff]
      %86 = vst [vmem:[#allocation2] sm:$0xff] %v85
    $region45: #{tpu_custom_call.1} parent=1 // pred_fallthru
      _
    %v87 = vld [vmem:[#allocation5] sm:$0xf]
    %v88 = vld [vmem:[#allocation5 + $0x4] sm:$0xf]
    %v89 = vld [vmem:[#allocation5 + $0x8] sm:$0xf]
    %v90 = vld [vmem:[#allocation5 + $0xc] sm:$0xf]
    %v91 = vld [vmem:[#allocation5 + $0x10] sm:$0xf]
    %v92 = vld [vmem:[#allocation5 + $0x14] sm:$0xf]
    %v93 = vld [vmem:[#allocation5 + $0x18] sm:$0xf]
    %v94 = vld [vmem:[#allocation5 + $0x1c] sm:$0xf]
    %v95 = vld [vmem:[#allocation10] sm:$0xff]
    %v96 = vld [vmem:[#allocation10 + $0x8] sm:$0xf]
    %v97 = vld [vmem:[#allocation10 + $0xc] sm:$0xff]
    %v98 = vld [vmem:[#allocation10 + $0x14] sm:$0xf]
    %v99 = vld [vmem:[#allocation10 + $0x18] sm:$0xff]
    %v100 = vld [vmem:[#allocation10 + $0x20] sm:$0xf]
    %v101 = vld [vmem:[#allocation10 + $0x24] sm:$0xff]
    %v102 = vld [vmem:[#allocation10 + $0x2c] sm:$0xf]
    %v103 = vld [vmem:[#allocation10 + $0x30] sm:$0xff]
    %v104 = vld [vmem:[#allocation10 + $0x38] sm:$0xf]
    %v105 = vld [vmem:[#allocation10 + $0x3c] sm:$0xff]
    %v106 = vld [vmem:[#allocation10 + $0x44] sm:$0xf]
    %v107 = vld [vmem:[#allocation10 + $0x48] sm:$0xff]
    %v108 = vld [vmem:[#allocation10 + $0x50] sm:$0xf]
    %v109 = vld [vmem:[#allocation10 + $0x54] sm:$0xff]
    %v110 = vld [vmem:[#allocation10 + $0x5c] sm:$0xf]
    %v111 = vld [vmem:[#allocation10 + $0x60] sm:$0xff]
    %v112 = vld [vmem:[#allocation10 + $0x68] sm:$0xf]
    %v113 = vld [vmem:[#allocation10 + $0x6c] sm:$0xff]
    %v114 = vld [vmem:[#allocation10 + $0x74] sm:$0xf]
    %v115 = vld [vmem:[#allocation10 + $0x78] sm:$0xff]
    %v116 = vld [vmem:[#allocation10 + $0x80] sm:$0xf]
    %v117 = vld [vmem:[#allocation10 + $0x84] sm:$0xff]
    %v118 = vld [vmem:[#allocation10 + $0x8c] sm:$0xf]
    %v119 = vld [vmem:[#allocation10 + $0x90] sm:$0xff]
    %v120 = vld [vmem:[#allocation10 + $0x98] sm:$0xf]
    %v121 = vld [vmem:[#allocation10 + $0x9c] sm:$0xff]
    %v122 = vld [vmem:[#allocation10 + $0xa4] sm:$0xf]
    %v123 = vld [vmem:[#allocation10 + $0xa8] sm:$0xff]
    %v124 = vld [vmem:[#allocation10 + $0xb0] sm:$0xf]
    %v125 = vld [vmem:[#allocation10 + $0xb4] sm:$0xff]
    %v126 = vld [vmem:[#allocation10 + $0xbc] sm:$0xf]
    %v127 = vld [vmem:[%s3] sm:$0x7]
    %v129 = vlaneseq
    %v130 = vshrl.u32 %v129, 7
    %v131 = vsub.s32 0, %v130
    %v132 = vrot.slane %v127, %v131
    %v133 = vlaneseq
    %v134 = vshrl.u32 %v133, 7
    %v135 = vsub.s32 1, %v134
    %v136 = vrot.slane %v127, %v135
    %v137 = vlaneseq
    %v138 = vshrl.u32 %v137, 7
    %v139 = vsub.s32 2, %v138
    %v140 = vrot.slane %v127, %v139
    %v152 = vunpack.c.l.b16 %v87
    %v153 = vunpack.c.l.b16 %v88
    %v154 = vunpack.c.l.b16 %v89
    %v155 = vunpack.c.l.b16 %v90
    %v156 = vunpack.c.l.b16 %v91
    %v157 = vunpack.c.l.b16 %v92
    %v158 = vunpack.c.l.b16 %v93
    %v159 = vunpack.c.l.b16 %v94
    %v160 = vpack.c.b16 %v153, %v152
    %v161 = vpack.c.b16 %v155, %v154
    %v162 = vpack.c.b16 %v157, %v156
    %v163 = vpack.c.b16 %v159, %v158
    %v200 = vunpack.c.l.b16 %v95
    %v201 = vunpack.c.h.b16 %v95
    %v202 = vunpack.c.l.b16 %v96
    %v203 = vunpack.c.l.b16 %v97
    %v204 = vunpack.c.h.b16 %v97
    %v205 = vunpack.c.l.b16 %v98
    %v206 = vunpack.c.l.b16 %v99
    %v207 = vunpack.c.h.b16 %v99
    %v208 = vunpack.c.l.b16 %v100
    %v209 = vunpack.c.l.b16 %v101
    %v210 = vunpack.c.h.b16 %v101
    %v211 = vunpack.c.l.b16 %v102
    %v212 = vunpack.c.l.b16 %v103
    %v213 = vunpack.c.h.b16 %v103
    %v214 = vunpack.c.l.b16 %v104
    %v215 = vunpack.c.l.b16 %v105
    %v216 = vunpack.c.h.b16 %v105
    %v217 = vunpack.c.l.b16 %v106
    %v218 = vunpack.c.l.b16 %v107
    %v219 = vunpack.c.h.b16 %v107
    %v220 = vunpack.c.l.b16 %v108
    %v221 = vunpack.c.l.b16 %v109
    %v222 = vunpack.c.h.b16 %v109
    %v223 = vunpack.c.l.b16 %v110
    %v224 = vunpack.c.l.b16 %v111
    %v225 = vunpack.c.h.b16 %v111
    %v226 = vunpack.c.l.b16 %v112
    %v227 = vunpack.c.l.b16 %v113
    %v228 = vunpack.c.h.b16 %v113
    %v229 = vunpack.c.l.b16 %v114
    %v230 = vunpack.c.l.b16 %v115
    %v231 = vunpack.c.h.b16 %v115
    %v232 = vunpack.c.l.b16 %v116
    %v233 = vunpack.c.l.b16 %v117
    %v234 = vunpack.c.h.b16 %v117
    %v235 = vunpack.c.l.b16 %v118
    %v236 = vunpack.c.l.b16 %v119
    %v237 = vunpack.c.h.b16 %v119
    %v238 = vunpack.c.l.b16 %v120
    %v239 = vunpack.c.l.b16 %v121
    %v240 = vunpack.c.h.b16 %v121
    %v241 = vunpack.c.l.b16 %v122
    %v242 = vunpack.c.l.b16 %v123
    %v243 = vunpack.c.h.b16 %v123
    %v244 = vunpack.c.l.b16 %v124
    %v245 = vunpack.c.l.b16 %v125
    %v246 = vunpack.c.h.b16 %v125
    %v247 = vunpack.c.l.b16 %v126
    %v248 = vpack.c.b16 %v203, %v200
    %v249 = vpack.c.b16 %v204, %v201
    %v250 = vpack.c.b16 %v205, %v202
    %v251 = vpack.c.b16 %v209, %v206
    %v252 = vpack.c.b16 %v210, %v207
    %v253 = vpack.c.b16 %v211, %v208
    %v254 = vpack.c.b16 %v215, %v212
    %v255 = vpack.c.b16 %v216, %v213
    %v256 = vpack.c.b16 %v217, %v214
    %v257 = vpack.c.b16 %v221, %v218
    %v258 = vpack.c.b16 %v222, %v219
    %v259 = vpack.c.b16 %v223, %v220
    %v260 = vpack.c.b16 %v227, %v224
    %v261 = vpack.c.b16 %v228, %v225
    %v262 = vpack.c.b16 %v229, %v226
    %v263 = vpack.c.b16 %v233, %v230
    %v264 = vpack.c.b16 %v234, %v231
    %v265 = vpack.c.b16 %v235, %v232
    %v266 = vpack.c.b16 %v239, %v236
    %v267 = vpack.c.b16 %v240, %v237
    %v268 = vpack.c.b16 %v241, %v238
    %v269 = vpack.c.b16 %v245, %v242
    %v270 = vpack.c.b16 %v246, %v243
    %v271 = vpack.c.b16 %v247, %v244
    %296 = vmatprep.subr.bf16.mxu0 %v270
    %297 = vmatpush1.bf16.msra.mxu0 %v269
    %298 = vmatprep.subr.bf16.mxu0 %v267
    %299 = vmatpush1.bf16.msra.mxu0 %v266
    %300 = vmatprep.subr.bf16.mxu0 %v264
    %301 = vmatpush1.bf16.msra.mxu0 %v263
    %302 = vmatprep.subr.bf16.mxu0 %v261
    %303 = vmatpush1.bf16.msra.mxu0 %v260
    %304 = vmatprep.subr.bf16.mxu0 %v258
    %305 = vmatpush1.bf16.msra.mxu0 %v257
    %306 = vmatprep.subr.bf16.mxu0 %v255
    %307 = vmatpush1.bf16.msra.mxu0 %v254
    %308 = vmatprep.subr.bf16.mxu0 %v252
    %309 = vmatpush1.bf16.msra.mxu0 %v251
    %310 = vmatprep.subr.bf16.mxu0 %v249
    %311 = vmatpush1.bf16.msra.mxu0 %v248
    %312 = vmatprep.subr.bf16.mxu0 0
    %313 = vmatpush2.bf16.msra.mxu0 0
    %314 = vmatprep.subr.bf16.mxu0 0
    %315 = vmatpush2.bf16.msra.mxu0 0
    %316 = vmatprep.subr.bf16.mxu0 0
    %317 = vmatpush2.bf16.msra.mxu0 0
    %318 = vmatprep.subr.bf16.mxu0 0
    %319 = vmatpush2.bf16.msra.mxu0 0
    %320 = vmatprep.subr.bf16.mxu0 0
    %321 = vmatpush2.bf16.msra.mxu0 0
    %322 = vmatprep.subr.bf16.mxu0 0
    %323 = vmatpush2.bf16.msra.mxu0 0
    %324 = vmatprep.subr.bf16.mxu0 0
    %325 = vmatpush2.bf16.msra.mxu0 0
    %326 = vmatprep.subr.bf16.mxu0 0
    %327 = vmatpush2.bf16.msra.mxu0 0
    %328 = vmatprep.mubr.bf16.mxu0 0
    %329 = vmatmul.mubr.bf16.gmra.mxu0 %v160
    %v330 = vpop.f32.mrf.mxu0
    %v331 = vadd.f32 %v132, %v330
    %v332 = vpop.f32.mrf.mxu0
    %v333 = vadd.f32 %v136, %v332
    %v334 = vpop.f32.mrf.mxu0
    %v335 = vadd.f32 %v132, %v334
    %v336 = vpop.f32.mrf.mxu0
    %v337 = vadd.f32 %v136, %v336
    %338 = vmatprep.mubr.bf16.mxu0 0
    %339 = vmatmul.mubr.bf16.gmra.mxu0 %v161
    %v340 = vpop.f32.mrf.mxu0
    %v341 = vadd.f32 %v132, %v340
    %v342 = vpop.f32.mrf.mxu0
    %v343 = vadd.f32 %v136, %v342
    %v344 = vpop.f32.mrf.mxu0
    %v345 = vadd.f32 %v132, %v344
    %v346 = vpop.f32.mrf.mxu0
    %v347 = vadd.f32 %v136, %v346
    %348 = vmatprep.mubr.bf16.mxu0 0
    %349 = vmatmul.mubr.bf16.gmra.mxu0 %v162
    %v350 = vpop.f32.mrf.mxu0
    %v351 = vadd.f32 %v132, %v350
    %v352 = vpop.f32.mrf.mxu0
    %v353 = vadd.f32 %v136, %v352
    %v354 = vpop.f32.mrf.mxu0
    %v355 = vadd.f32 %v132, %v354
    %v356 = vpop.f32.mrf.mxu0
    %v357 = vadd.f32 %v136, %v356
    %358 = vmatprep.mubr.bf16.mxu0 0
    %359 = vmatmul.mubr.bf16.gmra.mxu0 %v163
    %v360 = vpop.f32.mrf.mxu0
    %v361 = vadd.f32 %v132, %v360
    %v362 = vpop.f32.mrf.mxu0
    %v363 = vadd.f32 %v136, %v362
    %v364 = vpop.f32.mrf.mxu0
    %v365 = vadd.f32 %v132, %v364
    %v366 = vpop.f32.mrf.mxu0
    %v367 = vadd.f32 %v136, %v366
    %368 = vdwg.mxu0
    %369 = vmatprep.subr.bf16.mxu0 0
    %370 = vmatpush1.bf16.msra.mxu0 %v271
    %371 = vmatprep.subr.bf16.mxu0 0
    %372 = vmatpush1.bf16.msra.mxu0 %v268
    %373 = vmatprep.subr.bf16.mxu0 0
    %374 = vmatpush1.bf16.msra.mxu0 %v265
    %375 = vmatprep.subr.bf16.mxu0 0
    %376 = vmatpush1.bf16.msra.mxu0 %v262
    %377 = vmatprep.subr.bf16.mxu0 0
    %378 = vmatpush1.bf16.msra.mxu0 %v259
    %379 = vmatprep.subr.bf16.mxu0 0
    %380 = vmatpush1.bf16.msra.mxu0 %v256
    %381 = vmatprep.subr.bf16.mxu0 0
    %382 = vmatpush1.bf16.msra.mxu0 %v253
    %383 = vmatprep.subr.bf16.mxu0 0
    %384 = vmatpush1.bf16.msra.mxu0 %v250
    %385 = vmatprep.subr.bf16.mxu0 0
    %386 = vmatpush2.bf16.msra.mxu0 0
    %387 = vmatprep.subr.bf16.mxu0 0
    %388 = vmatpush2.bf16.msra.mxu0 0
    %389 = vmatprep.subr.bf16.mxu0 0
    %390 = vmatpush2.bf16.msra.mxu0 0
    %391 = vmatprep.subr.bf16.mxu0 0
    %392 = vmatpush2.bf16.msra.mxu0 0
    %393 = vmatprep.subr.bf16.mxu0 0
    %394 = vmatpush2.bf16.msra.mxu0 0
    %395 = vmatprep.subr.bf16.mxu0 0
    %396 = vmatpush2.bf16.msra.mxu0 0
    %397 = vmatprep.subr.bf16.mxu0 0
    %398 = vmatpush2.bf16.msra.mxu0 0
    %399 = vmatprep.subr.bf16.mxu0 0
    %400 = vmatpush2.bf16.msra.mxu0 0
    %401 = vmatprep.mubr.bf16.mxu0 0
    %402 = vmatmul.mubr.bf16.gmra.mxu0 %v160
    %v403 = vpop.f32.mrf.mxu0
    %v404 = vadd.f32 %v140, %v403
    %v405 = vpop.f32.mrf.mxu0
    %v406 = vpop.f32.mrf.mxu0
    %v407 = vadd.f32 %v140, %v406
    %v408 = vpop.f32.mrf.mxu0
    %409 = vmatprep.mubr.bf16.mxu0 0
    %410 = vmatmul.mubr.bf16.gmra.mxu0 %v161
    %v411 = vpop.f32.mrf.mxu0
    %v412 = vadd.f32 %v140, %v411
    %v413 = vpop.f32.mrf.mxu0
    %v414 = vpop.f32.mrf.mxu0
    %v415 = vadd.f32 %v140, %v414
    %v416 = vpop.f32.mrf.mxu0
    %417 = vmatprep.mubr.bf16.mxu0 0
    %418 = vmatmul.mubr.bf16.gmra.mxu0 %v162
    %v419 = vpop.f32.mrf.mxu0
    %v420 = vadd.f32 %v140, %v419
    %v421 = vpop.f32.mrf.mxu0
    %v422 = vpop.f32.mrf.mxu0
    %v423 = vadd.f32 %v140, %v422
    %v424 = vpop.f32.mrf.mxu0
    %425 = vmatprep.mubr.bf16.mxu0 0
    %426 = vmatmul.mubr.bf16.gmra.mxu0 %v163
    %v427 = vpop.f32.mrf.mxu0
    %v428 = vadd.f32 %v140, %v427
    %v429 = vpop.f32.mrf.mxu0
    %v430 = vpop.f32.mrf.mxu0
    %v431 = vadd.f32 %v140, %v430
    %v432 = vpop.f32.mrf.mxu0
    %433 = vdwg.mxu0
    %434 = vst [vmem:[#allocation3] sm:$0xff] %v331
    %435 = vst [vmem:[#allocation3 + $0x8] sm:$0xff] %v333
    %436 = vst [vmem:[#allocation3 + $0x10] sm:$0xff] %v404
    %437 = vst [vmem:[#allocation3 + $0x18] sm:$0xff] %v335
    %438 = vst [vmem:[#allocation3 + $0x20] sm:$0xff] %v337
    %439 = vst [vmem:[#allocation3 + $0x28] sm:$0xff] %v407
    %440 = vst [vmem:[#allocation3 + $0x30] sm:$0xff] %v341
    %441 = vst [vmem:[#allocation3 + $0x38] sm:$0xff] %v343
    %442 = vst [vmem:[#allocation3 + $0x40] sm:$0xff] %v412
    %443 = vst [vmem:[#allocation3 + $0x48] sm:$0xff] %v345
    %444 = vst [vmem:[#allocation3 + $0x50] sm:$0xff] %v347
    %445 = vst [vmem:[#allocation3 + $0x58] sm:$0xff] %v415
    %446 = vst [vmem:[#allocation3 + $0x60] sm:$0xff] %v351
    %447 = vst [vmem:[#allocation3 + $0x68] sm:$0xff] %v353
    %448 = vst [vmem:[#allocation3 + $0x70] sm:$0xff] %v420
    %449 = vst [vmem:[#allocation3 + $0x78] sm:$0xff] %v355
    %450 = vst [vmem:[#allocation3 + $0x80] sm:$0xff] %v357
    %451 = vst [vmem:[#allocation3 + $0x88] sm:$0xff] %v423
    %452 = vst [vmem:[#allocation3 + $0x90] sm:$0xff] %v361
    %453 = vst [vmem:[#allocation3 + $0x98] sm:$0xff] %v363
    %454 = vst [vmem:[#allocation3 + $0xa0] sm:$0xff] %v428
    %455 = vst [vmem:[#allocation3 + $0xa8] sm:$0xff] %v365
    %456 = vst [vmem:[#allocation3 + $0xb0] sm:$0xff] %v367
    %457 = vst [vmem:[#allocation3 + $0xb8] sm:$0xff] %v431
    %v458 = vld [vmem:[%s5] sm:$0x7]
    %v459 = vld [vmem:[#allocation11] sm:$0xff]
    %v460 = vld [vmem:[#allocation11 + $0x8] sm:$0xf]
    %v461 = vld [vmem:[#allocation11 + $0xc] sm:$0xff]
    %v462 = vld [vmem:[#allocation11 + $0x14] sm:$0xf]
    %v463 = vld [vmem:[#allocation11 + $0x18] sm:$0xff]
    %v464 = vld [vmem:[#allocation11 + $0x20] sm:$0xf]
    %v465 = vld [vmem:[#allocation11 + $0x24] sm:$0xff]
    %v466 = vld [vmem:[#allocation11 + $0x2c] sm:$0xf]
    %v467 = vld [vmem:[#allocation11 + $0x30] sm:$0xff]
    %v468 = vld [vmem:[#allocation11 + $0x38] sm:$0xf]
    %v469 = vld [vmem:[#allocation11 + $0x3c] sm:$0xff]
    %v470 = vld [vmem:[#allocation11 + $0x44] sm:$0xf]
    %v471 = vld [vmem:[#allocation11 + $0x48] sm:$0xff]
    %v472 = vld [vmem:[#allocation11 + $0x50] sm:$0xf]
    %v473 = vld [vmem:[#allocation11 + $0x54] sm:$0xff]
    %v474 = vld [vmem:[#allocation11 + $0x5c] sm:$0xf]
    %v475 = vld [vmem:[#allocation11 + $0x60] sm:$0xff]
    %v476 = vld [vmem:[#allocation11 + $0x68] sm:$0xf]
    %v477 = vld [vmem:[#allocation11 + $0x6c] sm:$0xff]
    %v478 = vld [vmem:[#allocation11 + $0x74] sm:$0xf]
    %v479 = vld [vmem:[#allocation11 + $0x78] sm:$0xff]
    %v480 = vld [vmem:[#allocation11 + $0x80] sm:$0xf]
    %v481 = vld [vmem:[#allocation11 + $0x84] sm:$0xff]
    %v482 = vld [vmem:[#allocation11 + $0x8c] sm:$0xf]
    %v483 = vld [vmem:[#allocation11 + $0x90] sm:$0xff]
    %v484 = vld [vmem:[#allocation11 + $0x98] sm:$0xf]
    %v485 = vld [vmem:[#allocation11 + $0x9c] sm:$0xff]
    %v486 = vld [vmem:[#allocation11 + $0xa4] sm:$0xf]
    %v487 = vld [vmem:[#allocation11 + $0xa8] sm:$0xff]
    %v488 = vld [vmem:[#allocation11 + $0xb0] sm:$0xf]
    %v489 = vld [vmem:[#allocation11 + $0xb4] sm:$0xff]
    %v490 = vld [vmem:[#allocation11 + $0xbc] sm:$0xf]
    %v491 = vld [vmem:[#allocation2] sm:$0xff]
    %s492 = smul.u32 0, 3
    %s493 = smul.addr %s492, 8
    %s494 = scalar_lea.vmem [#allocation3], %s493
    %v495 = vld [vmem:[%s494] sm:$0xff]
    %v496 = vld [vmem:[%s494 + $0x8] sm:$0xff]
    %v497 = vld [vmem:[%s494 + $0x10] sm:$0xff]
    %v498 = vpack.c.bf16 %v491, %v491
    %v500 = vlaneseq
    %v501 = vshrl.u32 %v500, 7
    %v502 = vsub.s32 0, %v501
    %v503 = vrot.slane %v458, %v502
    %v504 = vlaneseq
    %v505 = vshrl.u32 %v504, 7
    %v506 = vsub.s32 1, %v505
    %v507 = vrot.slane %v458, %v506
    %v508 = vlaneseq
    %v509 = vshrl.u32 %v508, 7
    %v510 = vsub.s32 2, %v509
    %v511 = vrot.slane %v458, %v510
    %v547 = vunpack.c.l.b16 %v459
    %v548 = vunpack.c.h.b16 %v459
    %v549 = vunpack.c.l.b16 %v460
    %v550 = vunpack.c.l.b16 %v461
    %v551 = vunpack.c.h.b16 %v461
    %v552 = vunpack.c.l.b16 %v462
    %v553 = vunpack.c.l.b16 %v463
    %v554 = vunpack.c.h.b16 %v463
    %v555 = vunpack.c.l.b16 %v464
    %v556 = vunpack.c.l.b16 %v465
    %v557 = vunpack.c.h.b16 %v465
    %v558 = vunpack.c.l.b16 %v466
    %v559 = vunpack.c.l.b16 %v467
    %v560 = vunpack.c.h.b16 %v467
    %v561 = vunpack.c.l.b16 %v468
    %v562 = vunpack.c.l.b16 %v469
    %v563 = vunpack.c.h.b16 %v469
    %v564 = vunpack.c.l.b16 %v470
    %v565 = vunpack.c.l.b16 %v471
    %v566 = vunpack.c.h.b16 %v471
    %v567 = vunpack.c.l.b16 %v472
    %v568 = vunpack.c.l.b16 %v473
    %v569 = vunpack.c.h.b16 %v473
    %v570 = vunpack.c.l.b16 %v474
    %v571 = vunpack.c.l.b16 %v475
    %v572 = vunpack.c.h.b16 %v475
    %v573 = vunpack.c.l.b16 %v476
    %v574 = vunpack.c.l.b16 %v477
    %v575 = vunpack.c.h.b16 %v477
    %v576 = vunpack.c.l.b16 %v478
    %v577 = vunpack.c.l.b16 %v479
    %v578 = vunpack.c.h.b16 %v479
    %v579 = vunpack.c.l.b16 %v480
    %v580 = vunpack.c.l.b16 %v481
    %v581 = vunpack.c.h.b16 %v481
    %v582 = vunpack.c.l.b16 %v482
    %v583 = vunpack.c.l.b16 %v483
    %v584 = vunpack.c.h.b16 %v483
    %v585 = vunpack.c.l.b16 %v484
    %v586 = vunpack.c.l.b16 %v485
    %v587 = vunpack.c.h.b16 %v485
    %v588 = vunpack.c.l.b16 %v486
    %v589 = vunpack.c.l.b16 %v487
    %v590 = vunpack.c.h.b16 %v487
    %v591 = vunpack.c.l.b16 %v488
    %v592 = vunpack.c.l.b16 %v489
    %v593 = vunpack.c.h.b16 %v489
    %v594 = vunpack.c.l.b16 %v490
    %v595 = vpack.c.b16 %v550, %v547
    %v596 = vpack.c.b16 %v551, %v548
    %v597 = vpack.c.b16 %v552, %v549
    %v598 = vpack.c.b16 %v556, %v553
    %v599 = vpack.c.b16 %v557, %v554
    %v600 = vpack.c.b16 %v558, %v555
    %v601 = vpack.c.b16 %v562, %v559
    %v602 = vpack.c.b16 %v563, %v560
    %v603 = vpack.c.b16 %v564, %v561
    %v604 = vpack.c.b16 %v568, %v565
    %v605 = vpack.c.b16 %v569, %v566
    %v606 = vpack.c.b16 %v570, %v567
    %v607 = vpack.c.b16 %v574, %v571
    %v608 = vpack.c.b16 %v575, %v572
    %v609 = vpack.c.b16 %v576, %v573
    %v610 = vpack.c.b16 %v580, %v577
    %v611 = vpack.c.b16 %v581, %v578
    %v612 = vpack.c.b16 %v582, %v579
    %v613 = vpack.c.b16 %v586, %v583
    %v614 = vpack.c.b16 %v587, %v584
    %v615 = vpack.c.b16 %v588, %v585
    %v616 = vpack.c.b16 %v592, %v589
    %v617 = vpack.c.b16 %v593, %v590
    %v618 = vpack.c.b16 %v594, %v591
    %643 = vmatprep.subr.bf16.mxu0 %v617
    %644 = vmatpush1.bf16.msra.mxu0 %v616
    %645 = vmatprep.subr.bf16.mxu0 %v614
    %646 = vmatpush1.bf16.msra.mxu0 %v613
    %647 = vmatprep.subr.bf16.mxu0 %v611
    %648 = vmatpush1.bf16.msra.mxu0 %v610
    %649 = vmatprep.subr.bf16.mxu0 %v608
    %650 = vmatpush1.bf16.msra.mxu0 %v607
    %651 = vmatprep.subr.bf16.mxu0 %v605
    %652 = vmatpush1.bf16.msra.mxu0 %v604
    %653 = vmatprep.subr.bf16.mxu0 %v602
    %654 = vmatpush1.bf16.msra.mxu0 %v601
    %655 = vmatprep.subr.bf16.mxu0 %v599
    %656 = vmatpush1.bf16.msra.mxu0 %v598
    %657 = vmatprep.subr.bf16.mxu0 %v596
    %658 = vmatpush1.bf16.msra.mxu0 %v595
    %659 = vmatprep.subr.bf16.mxu0 0
    %660 = vmatpush2.bf16.msra.mxu0 0
    %661 = vmatprep.subr.bf16.mxu0 0
    %662 = vmatpush2.bf16.msra.mxu0 0
    %663 = vmatprep.subr.bf16.mxu0 0
    %664 = vmatpush2.bf16.msra.mxu0 0
    %665 = vmatprep.subr.bf16.mxu0 0
    %666 = vmatpush2.bf16.msra.mxu0 0
    %667 = vmatprep.subr.bf16.mxu0 0
    %668 = vmatpush2.bf16.msra.mxu0 0
    %669 = vmatprep.subr.bf16.mxu0 0
    %670 = vmatpush2.bf16.msra.mxu0 0
    %671 = vmatprep.subr.bf16.mxu0 0
    %672 = vmatpush2.bf16.msra.mxu0 0
    %673 = vmatprep.subr.bf16.mxu0 0
    %674 = vmatpush2.bf16.msra.mxu0 0
    %675 = vmatprep.mubr.bf16.mxu0 0
    %676 = vmatmul.mubr.bf16.gmra.mxu0 %v498
    %v677 = vpop.f32.mrf.mxu0
    %v678 = vadd.f32 %v503, %v677
    %v679 = vpop.f32.mrf.mxu0
    %v680 = vadd.f32 %v507, %v679
    %v681 = vpop.f32.mrf.mxu0
    %v682 = vpop.f32.mrf.mxu0
    %683 = vdwg.mxu0
    %684 = vmatprep.subr.bf16.mxu0 0
    %685 = vmatpush1.bf16.msra.mxu0 %v618
    %686 = vmatprep.subr.bf16.mxu0 0
    %687 = vmatpush1.bf16.msra.mxu0 %v615
    %688 = vmatprep.subr.bf16.mxu0 0
    %689 = vmatpush1.bf16.msra.mxu0 %v612
    %690 = vmatprep.subr.bf16.mxu0 0
    %691 = vmatpush1.bf16.msra.mxu0 %v609
    %692 = vmatprep.subr.bf16.mxu0 0
    %693 = vmatpush1.bf16.msra.mxu0 %v606
    %694 = vmatprep.subr.bf16.mxu0 0
    %695 = vmatpush1.bf16.msra.mxu0 %v603
    %696 = vmatprep.subr.bf16.mxu0 0
    %697 = vmatpush1.bf16.msra.mxu0 %v600
    %698 = vmatprep.subr.bf16.mxu0 0
    %699 = vmatpush1.bf16.msra.mxu0 %v597
    %700 = vmatprep.subr.bf16.mxu0 0
    %701 = vmatpush2.bf16.msra.mxu0 0
    %702 = vmatprep.subr.bf16.mxu0 0
    %703 = vmatpush2.bf16.msra.mxu0 0
    %704 = vmatprep.subr.bf16.mxu0 0
    %705 = vmatpush2.bf16.msra.mxu0 0
    %706 = vmatprep.subr.bf16.mxu0 0
    %707 = vmatpush2.bf16.msra.mxu0 0
    %708 = vmatprep.subr.bf16.mxu0 0
    %709 = vmatpush2.bf16.msra.mxu0 0
    %710 = vmatprep.subr.bf16.mxu0 0
    %711 = vmatpush2.bf16.msra.mxu0 0
    %712 = vmatprep.subr.bf16.mxu0 0
    %713 = vmatpush2.bf16.msra.mxu0 0
    %714 = vmatprep.subr.bf16.mxu0 0
    %715 = vmatpush2.bf16.msra.mxu0 0
    %716 = vmatprep.mubr.bf16.mxu0 0
    %717 = vmatmul.mubr.bf16.gmra.mxu0 %v498
    %v718 = vpop.f32.mrf.mxu0
    %v719 = vadd.f32 %v511, %v718
    %v720 = vpop.f32.mrf.mxu0
    %v721 = vpop.f32.mrf.mxu0
    %v722 = vpop.f32.mrf.mxu0
    %723 = vdwg.mxu0
    %v724 = vadd.f32 %v495, %v678
    %v725 = vxor.u32 %v724, 2147483648
    %v726 = vmul.f32 %v725, 1.442695
    %v727 = vpow.pop %v726
    %v728 = vadd.f32 %v727, 1.0
    %v729 = vrcp.pop %v728
    %v730 = vmul.f32 1.0, %v729
    %v731 = vadd.f32 %v496, %v680
    %v732 = vxor.u32 %v731, 2147483648
    %v733 = vmul.f32 %v732, 1.442695
    %v734 = vpow.pop %v733
    %v735 = vadd.f32 %v734, 1.0
    %v736 = vrcp.pop %v735
    %v737 = vmul.f32 1.0, %v736
    %v738 = vmul.f32 %v730, %v719
    %v739 = vadd.f32 %v497, %v738
    %v740 = vtanh.pop %v739
    %v741 = vsub.f32 1.0, %v737
    %v742 = vmul.f32 %v741, %v740
    %v743 = vmul.f32 %v737, %v491
    %v744 = vadd.f32 %v742, %v743
    %745 = vst [vmem:[#allocation4] sm:$0xff] %v744
    %746 = vst [vmem:[#allocation2] sm:$0xff] %v744
    %v747 = vld [vmem:[#allocation2] sm:$0xff]
    %s748 = smul.u32 1, 3
    %s749 = smul.addr %s748, 8
    %s750 = scalar_lea.vmem [#allocation3], %s749
    %v751 = vld [vmem:[%s750] sm:$0xff]
    %v752 = vld [vmem:[%s750 + $0x8] sm:$0xff]
    %v753 = vld [vmem:[%s750 + $0x10] sm:$0xff]
    %v754 = vpack.c.bf16 %v747, %v747
    %755 = vmatprep.subr.bf16.mxu0 %v617
    %756 = vmatpush1.bf16.msra.mxu0 %v616
    %757 = vmatprep.subr.bf16.mxu0 %v614
    %758 = vmatpush1.bf16.msra.mxu0 %v613
    %759 = vmatprep.subr.bf16.mxu0 %v611
    %760 = vmatpush1.bf16.msra.mxu0 %v610
    %761 = vmatprep.subr.bf16.mxu0 %v608
    %762 = vmatpush1.bf16.msra.mxu0 %v607
    %763 = vmatprep.subr.bf16.mxu0 %v605
    %764 = vmatpush1.bf16.msra.mxu0 %v604
    %765 = vmatprep.subr.bf16.mxu0 %v602
    %766 = vmatpush1.bf16.msra.mxu0 %v601
    %767 = vmatprep.subr.bf16.mxu0 %v599
    %768 = vmatpush1.bf16.msra.mxu0 %v598
    %769 = vmatprep.subr.bf16.mxu0 %v596
    %770 = vmatpush1.bf16.msra.mxu0 %v595
    %771 = vmatprep.subr.bf16.mxu0 0
    %772 = vmatpush2.bf16.msra.mxu0 0
    %773 = vmatprep.subr.bf16.mxu0 0
    %774 = vmatpush2.bf16.msra.mxu0 0
    %775 = vmatprep.subr.bf16.mxu0 0
    %776 = vmatpush2.bf16.msra.mxu0 0
    %777 = vmatprep.subr.bf16.mxu0 0
    %778 = vmatpush2.bf16.msra.mxu0 0
    %779 = vmatprep.subr.bf16.mxu0 0
    %780 = vmatpush2.bf16.msra.mxu0 0
    %781 = vmatprep.subr.bf16.mxu0 0
    %782 = vmatpush2.bf16.msra.mxu0 0
    %783 = vmatprep.subr.bf16.mxu0 0
    %784 = vmatpush2.bf16.msra.mxu0 0
    %785 = vmatprep.subr.bf16.mxu0 0
    %786 = vmatpush2.bf16.msra.mxu0 0
    %787 = vmatprep.mubr.bf16.mxu0 0
    %788 = vmatmul.mubr.bf16.gmra.mxu0 %v754
    %v789 = vpop.f32.mrf.mxu0
    %v790 = vadd.f32 %v503, %v789
    %v791 = vpop.f32.mrf.mxu0
    %v792 = vadd.f32 %v507, %v791
    %v793 = vpop.f32.mrf.mxu0
    %v794 = vpop.f32.mrf.mxu0
    %795 = vdwg.mxu0
    %796 = vmatprep.subr.bf16.mxu0 0
    %797 = vmatpush1.bf16.msra.mxu0 %v618
    %798 = vmatprep.subr.bf16.mxu0 0
    %799 = vmatpush1.bf16.msra.mxu0 %v615
    %800 = vmatprep.subr.bf16.mxu0 0
    %801 = vmatpush1.bf16.msra.mxu0 %v612
    %802 = vmatprep.subr.bf16.mxu0 0
    %803 = vmatpush1.bf16.msra.mxu0 %v609
    %804 = vmatprep.subr.bf16.mxu0 0
    %805 = vmatpush1.bf16.msra.mxu0 %v606
    %806 = vmatprep.subr.bf16.mxu0 0
    %807 = vmatpush1.bf16.msra.mxu0 %v603
    %808 = vmatprep.subr.bf16.mxu0 0
    %809 = vmatpush1.bf16.msra.mxu0 %v600
    %810 = vmatprep.subr.bf16.mxu0 0
    %811 = vmatpush1.bf16.msra.mxu0 %v597
    %812 = vmatprep.subr.bf16.mxu0 0
    %813 = vmatpush2.bf16.msra.mxu0 0
    %814 = vmatprep.subr.bf16.mxu0 0
    %815 = vmatpush2.bf16.msra.mxu0 0
    %816 = vmatprep.subr.bf16.mxu0 0
    %817 = vmatpush2.bf16.msra.mxu0 0
    %818 = vmatprep.subr.bf16.mxu0 0
    %819 = vmatpush2.bf16.msra.mxu0 0
    %820 = vmatprep.subr.bf16.mxu0 0
    %821 = vmatpush2.bf16.msra.mxu0 0
    %822 = vmatprep.subr.bf16.mxu0 0
    %823 = vmatpush2.bf16.msra.mxu0 0
    %824 = vmatprep.subr.bf16.mxu0 0
    %825 = vmatpush2.bf16.msra.mxu0 0
    %826 = vmatprep.subr.bf16.mxu0 0
    %827 = vmatpush2.bf16.msra.mxu0 0
    %828 = vmatprep.mubr.bf16.mxu0 0
    %829 = vmatmul.mubr.bf16.gmra.mxu0 %v754
    %v830 = vpop.f32.mrf.mxu0
    %v831 = vadd.f32 %v511, %v830
    %v832 = vpop.f32.mrf.mxu0
    %v833 = vpop.f32.mrf.mxu0
    %v834 = vpop.f32.mrf.mxu0
    %835 = vdwg.mxu0
    %v836 = vadd.f32 %v751, %v790
    %v837 = vxor.u32 %v836, 2147483648
    %v838 = vmul.f32 %v837, 1.442695
    %v839 = vpow.pop %v838
    %v840 = vadd.f32 %v839, 1.0
    %v841 = vrcp.pop %v840
    %v842 = vmul.f32 1.0, %v841
    %v843 = vadd.f32 %v752, %v792
    %v844 = vxor.u32 %v843, 2147483648
    %v845 = vmul.f32 %v844, 1.442695
    %v846 = vpow.pop %v845
    %v847 = vadd.f32 %v846, 1.0
    %v848 = vrcp.pop %v847
    %v849 = vmul.f32 1.0, %v848
    %v850 = vmul.f32 %v842, %v831
    %v851 = vadd.f32 %v753, %v850
    %v852 = vtanh.pop %v851
    %v853 = vsub.f32 1.0, %v849
    %v854 = vmul.f32 %v853, %v852
    %v855 = vmul.f32 %v849, %v747
    %v856 = vadd.f32 %v854, %v855
    %s857 = scalar_lea.vmem [#allocation4], 8
    %858 = vst [vmem:[%s857] sm:$0xff] %v856
    %859 = vst [vmem:[#allocation2] sm:$0xff] %v856
    %v860 = vld [vmem:[#allocation2] sm:$0xff]
    %s861 = smul.u32 2, 3
    %s862 = smul.addr %s861, 8
    %s863 = scalar_lea.vmem [#allocation3], %s862
    %v864 = vld [vmem:[%s863] sm:$0xff]
    %v865 = vld [vmem:[%s863 + $0x8] sm:$0xff]
    %v866 = vld [vmem:[%s863 + $0x10] sm:$0xff]
    %v867 = vpack.c.bf16 %v860, %v860
    %868 = vmatprep.subr.bf16.mxu0 %v617
    %869 = vmatpush1.bf16.msra.mxu0 %v616
    %870 = vmatprep.subr.bf16.mxu0 %v614
    %871 = vmatpush1.bf16.msra.mxu0 %v613
    %872 = vmatprep.subr.bf16.mxu0 %v611
    %873 = vmatpush1.bf16.msra.mxu0 %v610
    %874 = vmatprep.subr.bf16.mxu0 %v608
    %875 = vmatpush1.bf16.msra.mxu0 %v607
    %876 = vmatprep.subr.bf16.mxu0 %v605
    %877 = vmatpush1.bf16.msra.mxu0 %v604
    %878 = vmatprep.subr.bf16.mxu0 %v602
    %879 = vmatpush1.bf16.msra.mxu0 %v601
    %880 = vmatprep.subr.bf16.mxu0 %v599
    %881 = vmatpush1.bf16.msra.mxu0 %v598
    %882 = vmatprep.subr.bf16.mxu0 %v596
    %883 = vmatpush1.bf16.msra.mxu0 %v595
    %884 = vmatprep.subr.bf16.mxu0 0
    %885 = vmatpush2.bf16.msra.mxu0 0
    %886 = vmatprep.subr.bf16.mxu0 0
    %887 = vmatpush2.bf16.msra.mxu0 0
    %888 = vmatprep.subr.bf16.mxu0 0
    %889 = vmatpush2.bf16.msra.mxu0 0
    %890 = vmatprep.subr.bf16.mxu0 0
    %891 = vmatpush2.bf16.msra.mxu0 0
    %892 = vmatprep.subr.bf16.mxu0 0
    %893 = vmatpush2.bf16.msra.mxu0 0
    %894 = vmatprep.subr.bf16.mxu0 0
    %895 = vmatpush2.bf16.msra.mxu0 0
    %896 = vmatprep.subr.bf16.mxu0 0
    %897 = vmatpush2.bf16.msra.mxu0 0
    %898 = vmatprep.subr.bf16.mxu0 0
    %899 = vmatpush2.bf16.msra.mxu0 0
    %900 = vmatprep.mubr.bf16.mxu0 0
    %901 = vmatmul.mubr.bf16.gmra.mxu0 %v867
    %v902 = vpop.f32.mrf.mxu0
    %v903 = vadd.f32 %v503, %v902
    %v904 = vpop.f32.mrf.mxu0
    %v905 = vadd.f32 %v507, %v904
    %v906 = vpop.f32.mrf.mxu0
    %v907 = vpop.f32.mrf.mxu0
    %908 = vdwg.mxu0
    %909 = vmatprep.subr.bf16.mxu0 0
    %910 = vmatpush1.bf16.msra.mxu0 %v618
    %911 = vmatprep.subr.bf16.mxu0 0
    %912 = vmatpush1.bf16.msra.mxu0 %v615
    %913 = vmatprep.subr.bf16.mxu0 0
    %914 = vmatpush1.bf16.msra.mxu0 %v612
    %915 = vmatprep.subr.bf16.mxu0 0
    %916 = vmatpush1.bf16.msra.mxu0 %v609
    %917 = vmatprep.subr.bf16.mxu0 0
    %918 = vmatpush1.bf16.msra.mxu0 %v606
    %919 = vmatprep.subr.bf16.mxu0 0
    %920 = vmatpush1.bf16.msra.mxu0 %v603
    %921 = vmatprep.subr.bf16.mxu0 0
    %922 = vmatpush1.bf16.msra.mxu0 %v600
    %923 = vmatprep.subr.bf16.mxu0 0
    %924 = vmatpush1.bf16.msra.mxu0 %v597
    %925 = vmatprep.subr.bf16.mxu0 0
    %926 = vmatpush2.bf16.msra.mxu0 0
    %927 = vmatprep.subr.bf16.mxu0 0
    %928 = vmatpush2.bf16.msra.mxu0 0
    %929 = vmatprep.subr.bf16.mxu0 0
    %930 = vmatpush2.bf16.msra.mxu0 0
    %931 = vmatprep.subr.bf16.mxu0 0
    %932 = vmatpush2.bf16.msra.mxu0 0
    %933 = vmatprep.subr.bf16.mxu0 0
    %934 = vmatpush2.bf16.msra.mxu0 0
    %935 = vmatprep.subr.bf16.mxu0 0
    %936 = vmatpush2.bf16.msra.mxu0 0
    %937 = vmatprep.subr.bf16.mxu0 0
    %938 = vmatpush2.bf16.msra.mxu0 0
    %939 = vmatprep.subr.bf16.mxu0 0
    %940 = vmatpush2.bf16.msra.mxu0 0
    %941 = vmatprep.mubr.bf16.mxu0 0
    %942 = vmatmul.mubr.bf16.gmra.mxu0 %v867
    %v943 = vpop.f32.mrf.mxu0
    %v944 = vadd.f32 %v511, %v943
    %v945 = vpop.f32.mrf.mxu0
    %v946 = vpop.f32.mrf.mxu0
    %v947 = vpop.f32.mrf.mxu0
    %948 = vdwg.mxu0
    %v949 = vadd.f32 %v864, %v903
    %v950 = vxor.u32 %v949, 2147483648
    %v951 = vmul.f32 %v950, 1.442695
    %v952 = vpow.pop %v951
    %v953 = vadd.f32 %v952, 1.0
    %v954 = vrcp.pop %v953
    %v955 = vmul.f32 1.0, %v954
    %v956 = vadd.f32 %v865, %v905
    %v957 = vxor.u32 %v956, 2147483648
    %v958 = vmul.f32 %v957, 1.442695
    %v959 = vpow.pop %v958
    %v960 = vadd.f32 %v959, 1.0
    %v961 = vrcp.pop %v960
    %v962 = vmul.f32 1.0, %v961
    %v963 = vmul.f32 %v955, %v944
    %v964 = vadd.f32 %v866, %v963
    %v965 = vtanh.pop %v964
    %v966 = vsub.f32 1.0, %v962
    %v967 = vmul.f32 %v966, %v965
    %v968 = vmul.f32 %v962, %v860
    %v969 = vadd.f32 %v967, %v968
    %s970 = scalar_lea.vmem [#allocation4], 16
    %971 = vst [vmem:[%s970] sm:$0xff] %v969
    %972 = vst [vmem:[#allocation2] sm:$0xff] %v969
    %v973 = vld [vmem:[#allocation2] sm:$0xff]
    %s974 = smul.u32 3, 3
    %s975 = smul.addr %s974, 8
    %s976 = scalar_lea.vmem [#allocation3], %s975
    %v977 = vld [vmem:[%s976] sm:$0xff]
    %v978 = vld [vmem:[%s976 + $0x8] sm:$0xff]
    %v979 = vld [vmem:[%s976 + $0x10] sm:$0xff]
    %v980 = vpack.c.bf16 %v973, %v973
    %981 = vmatprep.subr.bf16.mxu0 %v617
    %982 = vmatpush1.bf16.msra.mxu0 %v616
    %983 = vmatprep.subr.bf16.mxu0 %v614
    %984 = vmatpush1.bf16.msra.mxu0 %v613
    %985 = vmatprep.subr.bf16.mxu0 %v611
    %986 = vmatpush1.bf16.msra.mxu0 %v610
    %987 = vmatprep.subr.bf16.mxu0 %v608
    %988 = vmatpush1.bf16.msra.mxu0 %v607
    %989 = vmatprep.subr.bf16.mxu0 %v605
    %990 = vmatpush1.bf16.msra.mxu0 %v604
    %991 = vmatprep.subr.bf16.mxu0 %v602
    %992 = vmatpush1.bf16.msra.mxu0 %v601
    %993 = vmatprep.subr.bf16.mxu0 %v599
    %994 = vmatpush1.bf16.msra.mxu0 %v598
    %995 = vmatprep.subr.bf16.mxu0 %v596
    %996 = vmatpush1.bf16.msra.mxu0 %v595
    %997 = vmatprep.subr.bf16.mxu0 0
    %998 = vmatpush2.bf16.msra.mxu0 0
    %999 = vmatprep.subr.bf16.mxu0 0
    %1000 = vmatpush2.bf16.msra.mxu0 0
    %1001 = vmatprep.subr.bf16.mxu0 0
    %1002 = vmatpush2.bf16.msra.mxu0 0
    %1003 = vmatprep.subr.bf16.mxu0 0
    %1004 = vmatpush2.bf16.msra.mxu0 0
    %1005 = vmatprep.subr.bf16.mxu0 0
    %1006 = vmatpush2.bf16.msra.mxu0 0
    %1007 = vmatprep.subr.bf16.mxu0 0
    %1008 = vmatpush2.bf16.msra.mxu0 0
    %1009 = vmatprep.subr.bf16.mxu0 0
    %1010 = vmatpush2.bf16.msra.mxu0 0
    %1011 = vmatprep.subr.bf16.mxu0 0
    %1012 = vmatpush2.bf16.msra.mxu0 0
    %1013 = vmatprep.mubr.bf16.mxu0 0
    %1014 = vmatmul.mubr.bf16.gmra.mxu0 %v980
    %v1015 = vpop.f32.mrf.mxu0
    %v1016 = vadd.f32 %v503, %v1015
    %v1017 = vpop.f32.mrf.mxu0
    %v1018 = vadd.f32 %v507, %v1017
    %v1019 = vpop.f32.mrf.mxu0
    %v1020 = vpop.f32.mrf.mxu0
    %1021 = vdwg.mxu0
    %1022 = vmatprep.subr.bf16.mxu0 0
    %1023 = vmatpush1.bf16.msra.mxu0 %v618
    %1024 = vmatprep.subr.bf16.mxu0 0
    %1025 = vmatpush1.bf16.msra.mxu0 %v615
    %1026 = vmatprep.subr.bf16.mxu0 0
    %1027 = vmatpush1.bf16.msra.mxu0 %v612
    %1028 = vmatprep.subr.bf16.mxu0 0
    %1029 = vmatpush1.bf16.msra.mxu0 %v609
    %1030 = vmatprep.subr.bf16.mxu0 0
    %1031 = vmatpush1.bf16.msra.mxu0 %v606
    %1032 = vmatprep.subr.bf16.mxu0 0
    %1033 = vmatpush1.bf16.msra.mxu0 %v603
    %1034 = vmatprep.subr.bf16.mxu0 0
    %1035 = vmatpush1.bf16.msra.mxu0 %v600
    %1036 = vmatprep.subr.bf16.mxu0 0
    %1037 = vmatpush1.bf16.msra.mxu0 %v597
    %1038 = vmatprep.subr.bf16.mxu0 0
    %1039 = vmatpush2.bf16.msra.mxu0 0
    %1040 = vmatprep.subr.bf16.mxu0 0
    %1041 = vmatpush2.bf16.msra.mxu0 0
    %1042 = vmatprep.subr.bf16.mxu0 0
    %1043 = vmatpush2.bf16.msra.mxu0 0
    %1044 = vmatprep.subr.bf16.mxu0 0
    %1045 = vmatpush2.bf16.msra.mxu0 0
    %1046 = vmatprep.subr.bf16.mxu0 0
    %1047 = vmatpush2.bf16.msra.mxu0 0
    %1048 = vmatprep.subr.bf16.mxu0 0
    %1049 = vmatpush2.bf16.msra.mxu0 0
    %1050 = vmatprep.subr.bf16.mxu0 0
    %1051 = vmatpush2.bf16.msra.mxu0 0
    %1052 = vmatprep.subr.bf16.mxu0 0
    %1053 = vmatpush2.bf16.msra.mxu0 0
    %1054 = vmatprep.mubr.bf16.mxu0 0
    %1055 = vmatmul.mubr.bf16.gmra.mxu0 %v980
    %v1056 = vpop.f32.mrf.mxu0
    %v1057 = vadd.f32 %v511, %v1056
    %v1058 = vpop.f32.mrf.mxu0
    %v1059 = vpop.f32.mrf.mxu0
    %v1060 = vpop.f32.mrf.mxu0
    %1061 = vdwg.mxu0
    %v1062 = vadd.f32 %v977, %v1016
    %v1063 = vxor.u32 %v1062, 2147483648
    %v1064 = vmul.f32 %v1063, 1.442695
    %v1065 = vpow.pop %v1064
    %v1066 = vadd.f32 %v1065, 1.0
    %v1067 = vrcp.pop %v1066
    %v1068 = vmul.f32 1.0, %v1067
    %v1069 = vadd.f32 %v978, %v1018
    %v1070 = vxor.u32 %v1069, 2147483648
    %v1071 = vmul.f32 %v1070, 1.442695
    %v1072 = vpow.pop %v1071
    %v1073 = vadd.f32 %v1072, 1.0
    %v1074 = vrcp.pop %v1073
    %v1075 = vmul.f32 1.0, %v1074
    %v1076 = vmul.f32 %v1068, %v1057
    %v1077 = vadd.f32 %v979, %v1076
    %v1078 = vtanh.pop %v1077
    %v1079 = vsub.f32 1.0, %v1075
    %v1080 = vmul.f32 %v1079, %v1078
    %v1081 = vmul.f32 %v1075, %v973
    %v1082 = vadd.f32 %v1080, %v1081
    %s1083 = scalar_lea.vmem [#allocation4], 24
    %1084 = vst [vmem:[%s1083] sm:$0xff] %v1082
    %1085 = vst [vmem:[#allocation2] sm:$0xff] %v1082
    %v1086 = vld [vmem:[#allocation2] sm:$0xff]
    %s1087 = smul.u32 4, 3
    %s1088 = smul.addr %s1087, 8
    %s1089 = scalar_lea.vmem [#allocation3], %s1088
    %v1090 = vld [vmem:[%s1089] sm:$0xff]
    %v1091 = vld [vmem:[%s1089 + $0x8] sm:$0xff]
    %v1092 = vld [vmem:[%s1089 + $0x10] sm:$0xff]
    %v1093 = vpack.c.bf16 %v1086, %v1086
    %1094 = vmatprep.subr.bf16.mxu0 %v617
    %1095 = vmatpush1.bf16.msra.mxu0 %v616
    %1096 = vmatprep.subr.bf16.mxu0 %v614
    %1097 = vmatpush1.bf16.msra.mxu0 %v613
    %1098 = vmatprep.subr.bf16.mxu0 %v611
    %1099 = vmatpush1.bf16.msra.mxu0 %v610
    %1100 = vmatprep.subr.bf16.mxu0 %v608
    %1101 = vmatpush1.bf16.msra.mxu0 %v607
    %1102 = vmatprep.subr.bf16.mxu0 %v605
    %1103 = vmatpush1.bf16.msra.mxu0 %v604
    %1104 = vmatprep.subr.bf16.mxu0 %v602
    %1105 = vmatpush1.bf16.msra.mxu0 %v601
    %1106 = vmatprep.subr.bf16.mxu0 %v599
    %1107 = vmatpush1.bf16.msra.mxu0 %v598
    %1108 = vmatprep.subr.bf16.mxu0 %v596
    %1109 = vmatpush1.bf16.msra.mxu0 %v595
    %1110 = vmatprep.subr.bf16.mxu0 0
    %1111 = vmatpush2.bf16.msra.mxu0 0
    %1112 = vmatprep.subr.bf16.mxu0 0
    %1113 = vmatpush2.bf16.msra.mxu0 0
    %1114 = vmatprep.subr.bf16.mxu0 0
    %1115 = vmatpush2.bf16.msra.mxu0 0
    %1116 = vmatprep.subr.bf16.mxu0 0
    %1117 = vmatpush2.bf16.msra.mxu0 0
    %1118 = vmatprep.subr.bf16.mxu0 0
    %1119 = vmatpush2.bf16.msra.mxu0 0
    %1120 = vmatprep.subr.bf16.mxu0 0
    %1121 = vmatpush2.bf16.msra.mxu0 0
    %1122 = vmatprep.subr.bf16.mxu0 0
    %1123 = vmatpush2.bf16.msra.mxu0 0
    %1124 = vmatprep.subr.bf16.mxu0 0
    %1125 = vmatpush2.bf16.msra.mxu0 0
    %1126 = vmatprep.mubr.bf16.mxu0 0
    %1127 = vmatmul.mubr.bf16.gmra.mxu0 %v1093
    %v1128 = vpop.f32.mrf.mxu0
    %v1129 = vadd.f32 %v503, %v1128
    %v1130 = vpop.f32.mrf.mxu0
    %v1131 = vadd.f32 %v507, %v1130
    %v1132 = vpop.f32.mrf.mxu0
    %v1133 = vpop.f32.mrf.mxu0
    %1134 = vdwg.mxu0
    %1135 = vmatprep.subr.bf16.mxu0 0
    %1136 = vmatpush1.bf16.msra.mxu0 %v618
    %1137 = vmatprep.subr.bf16.mxu0 0
    %1138 = vmatpush1.bf16.msra.mxu0 %v615
    %1139 = vmatprep.subr.bf16.mxu0 0
    %1140 = vmatpush1.bf16.msra.mxu0 %v612
    %1141 = vmatprep.subr.bf16.mxu0 0
    %1142 = vmatpush1.bf16.msra.mxu0 %v609
    %1143 = vmatprep.subr.bf16.mxu0 0
    %1144 = vmatpush1.bf16.msra.mxu0 %v606
    %1145 = vmatprep.subr.bf16.mxu0 0
    %1146 = vmatpush1.bf16.msra.mxu0 %v603
    %1147 = vmatprep.subr.bf16.mxu0 0
    %1148 = vmatpush1.bf16.msra.mxu0 %v600
    %1149 = vmatprep.subr.bf16.mxu0 0
    %1150 = vmatpush1.bf16.msra.mxu0 %v597
    %1151 = vmatprep.subr.bf16.mxu0 0
    %1152 = vmatpush2.bf16.msra.mxu0 0
    %1153 = vmatprep.subr.bf16.mxu0 0
    %1154 = vmatpush2.bf16.msra.mxu0 0
    %1155 = vmatprep.subr.bf16.mxu0 0
    %1156 = vmatpush2.bf16.msra.mxu0 0
    %1157 = vmatprep.subr.bf16.mxu0 0
    %1158 = vmatpush2.bf16.msra.mxu0 0
    %1159 = vmatprep.subr.bf16.mxu0 0
    %1160 = vmatpush2.bf16.msra.mxu0 0
    %1161 = vmatprep.subr.bf16.mxu0 0
    %1162 = vmatpush2.bf16.msra.mxu0 0
    %1163 = vmatprep.subr.bf16.mxu0 0
    %1164 = vmatpush2.bf16.msra.mxu0 0
    %1165 = vmatprep.subr.bf16.mxu0 0
    %1166 = vmatpush2.bf16.msra.mxu0 0
    %1167 = vmatprep.mubr.bf16.mxu0 0
    %1168 = vmatmul.mubr.bf16.gmra.mxu0 %v1093
    %v1169 = vpop.f32.mrf.mxu0
    %v1170 = vadd.f32 %v511, %v1169
    %v1171 = vpop.f32.mrf.mxu0
    %v1172 = vpop.f32.mrf.mxu0
    %v1173 = vpop.f32.mrf.mxu0
    %1174 = vdwg.mxu0
    %v1175 = vadd.f32 %v1090, %v1129
    %v1176 = vxor.u32 %v1175, 2147483648
    %v1177 = vmul.f32 %v1176, 1.442695
    %v1178 = vpow.pop %v1177
    %v1179 = vadd.f32 %v1178, 1.0
    %v1180 = vrcp.pop %v1179
    %v1181 = vmul.f32 1.0, %v1180
    %v1182 = vadd.f32 %v1091, %v1131
    %v1183 = vxor.u32 %v1182, 2147483648
    %v1184 = vmul.f32 %v1183, 1.442695
    %v1185 = vpow.pop %v1184
    %v1186 = vadd.f32 %v1185, 1.0
    %v1187 = vrcp.pop %v1186
    %v1188 = vmul.f32 1.0, %v1187
    %v1189 = vmul.f32 %v1181, %v1170
    %v1190 = vadd.f32 %v1092, %v1189
    %v1191 = vtanh.pop %v1190
    %v1192 = vsub.f32 1.0, %v1188
    %v1193 = vmul.f32 %v1192, %v1191
    %v1194 = vmul.f32 %v1188, %v1086
    %v1195 = vadd.f32 %v1193, %v1194
    %s1196 = scalar_lea.vmem [#allocation4], 32
    %1197 = vst [vmem:[%s1196] sm:$0xff] %v1195
    %1198 = vst [vmem:[#allocation2] sm:$0xff] %v1195
    %v1199 = vld [vmem:[#allocation2] sm:$0xff]
    %s1200 = smul.u32 5, 3
    %s1201 = smul.addr %s1200, 8
    %s1202 = scalar_lea.vmem [#allocation3], %s1201
    %v1203 = vld [vmem:[%s1202] sm:$0xff]
    %v1204 = vld [vmem:[%s1202 + $0x8] sm:$0xff]
    %v1205 = vld [vmem:[%s1202 + $0x10] sm:$0xff]
    %v1206 = vpack.c.bf16 %v1199, %v1199
    %1207 = vmatprep.subr.bf16.mxu0 %v617
    %1208 = vmatpush1.bf16.msra.mxu0 %v616
    %1209 = vmatprep.subr.bf16.mxu0 %v614
    %1210 = vmatpush1.bf16.msra.mxu0 %v613
    %1211 = vmatprep.subr.bf16.mxu0 %v611
    %1212 = vmatpush1.bf16.msra.mxu0 %v610
    %1213 = vmatprep.subr.bf16.mxu0 %v608
    %1214 = vmatpush1.bf16.msra.mxu0 %v607
    %1215 = vmatprep.subr.bf16.mxu0 %v605
    %1216 = vmatpush1.bf16.msra.mxu0 %v604
    %1217 = vmatprep.subr.bf16.mxu0 %v602
    %1218 = vmatpush1.bf16.msra.mxu0 %v601
    %1219 = vmatprep.subr.bf16.mxu0 %v599
    %1220 = vmatpush1.bf16.msra.mxu0 %v598
    %1221 = vmatprep.subr.bf16.mxu0 %v596
    %1222 = vmatpush1.bf16.msra.mxu0 %v595
    %1223 = vmatprep.subr.bf16.mxu0 0
    %1224 = vmatpush2.bf16.msra.mxu0 0
    %1225 = vmatprep.subr.bf16.mxu0 0
    %1226 = vmatpush2.bf16.msra.mxu0 0
    %1227 = vmatprep.subr.bf16.mxu0 0
    %1228 = vmatpush2.bf16.msra.mxu0 0
    %1229 = vmatprep.subr.bf16.mxu0 0
    %1230 = vmatpush2.bf16.msra.mxu0 0
    %1231 = vmatprep.subr.bf16.mxu0 0
    %1232 = vmatpush2.bf16.msra.mxu0 0
    %1233 = vmatprep.subr.bf16.mxu0 0
    %1234 = vmatpush2.bf16.msra.mxu0 0
    %1235 = vmatprep.subr.bf16.mxu0 0
    %1236 = vmatpush2.bf16.msra.mxu0 0
    %1237 = vmatprep.subr.bf16.mxu0 0
    %1238 = vmatpush2.bf16.msra.mxu0 0
    %1239 = vmatprep.mubr.bf16.mxu0 0
    %1240 = vmatmul.mubr.bf16.gmra.mxu0 %v1206
    %v1241 = vpop.f32.mrf.mxu0
    %v1242 = vadd.f32 %v503, %v1241
    %v1243 = vpop.f32.mrf.mxu0
    %v1244 = vadd.f32 %v507, %v1243
    %v1245 = vpop.f32.mrf.mxu0
    %v1246 = vpop.f32.mrf.mxu0
    %1247 = vdwg.mxu0
    %1248 = vmatprep.subr.bf16.mxu0 0
    %1249 = vmatpush1.bf16.msra.mxu0 %v618
    %1250 = vmatprep.subr.bf16.mxu0 0
    %1251 = vmatpush1.bf16.msra.mxu0 %v615
    %1252 = vmatprep.subr.bf16.mxu0 0
    %1253 = vmatpush1.bf16.msra.mxu0 %v612
    %1254 = vmatprep.subr.bf16.mxu0 0
    %1255 = vmatpush1.bf16.msra.mxu0 %v609
    %1256 = vmatprep.subr.bf16.mxu0 0
    %1257 = vmatpush1.bf16.msra.mxu0 %v606
    %1258 = vmatprep.subr.bf16.mxu0 0
    %1259 = vmatpush1.bf16.msra.mxu0 %v603
    %1260 = vmatprep.subr.bf16.mxu0 0
    %1261 = vmatpush1.bf16.msra.mxu0 %v600
    %1262 = vmatprep.subr.bf16.mxu0 0
    %1263 = vmatpush1.bf16.msra.mxu0 %v597
    %1264 = vmatprep.subr.bf16.mxu0 0
    %1265 = vmatpush2.bf16.msra.mxu0 0
    %1266 = vmatprep.subr.bf16.mxu0 0
    %1267 = vmatpush2.bf16.msra.mxu0 0
    %1268 = vmatprep.subr.bf16.mxu0 0
    %1269 = vmatpush2.bf16.msra.mxu0 0
    %1270 = vmatprep.subr.bf16.mxu0 0
    %1271 = vmatpush2.bf16.msra.mxu0 0
    %1272 = vmatprep.subr.bf16.mxu0 0
    %1273 = vmatpush2.bf16.msra.mxu0 0
    %1274 = vmatprep.subr.bf16.mxu0 0
    %1275 = vmatpush2.bf16.msra.mxu0 0
    %1276 = vmatprep.subr.bf16.mxu0 0
    %1277 = vmatpush2.bf16.msra.mxu0 0
    %1278 = vmatprep.subr.bf16.mxu0 0
    %1279 = vmatpush2.bf16.msra.mxu0 0
    %1280 = vmatprep.mubr.bf16.mxu0 0
    %1281 = vmatmul.mubr.bf16.gmra.mxu0 %v1206
    %v1282 = vpop.f32.mrf.mxu0
    %v1283 = vadd.f32 %v511, %v1282
    %v1284 = vpop.f32.mrf.mxu0
    %v1285 = vpop.f32.mrf.mxu0
    %v1286 = vpop.f32.mrf.mxu0
    %1287 = vdwg.mxu0
    %v1288 = vadd.f32 %v1203, %v1242
    %v1289 = vxor.u32 %v1288, 2147483648
    %v1290 = vmul.f32 %v1289, 1.442695
    %v1291 = vpow.pop %v1290
    %v1292 = vadd.f32 %v1291, 1.0
    %v1293 = vrcp.pop %v1292
    %v1294 = vmul.f32 1.0, %v1293
    %v1295 = vadd.f32 %v1204, %v1244
    %v1296 = vxor.u32 %v1295, 2147483648
    %v1297 = vmul.f32 %v1296, 1.442695
    %v1298 = vpow.pop %v1297
    %v1299 = vadd.f32 %v1298, 1.0
    %v1300 = vrcp.pop %v1299
    %v1301 = vmul.f32 1.0, %v1300
    %v1302 = vmul.f32 %v1294, %v1283
    %v1303 = vadd.f32 %v1205, %v1302
    %v1304 = vtanh.pop %v1303
    %v1305 = vsub.f32 1.0, %v1301
    %v1306 = vmul.f32 %v1305, %v1304
    %v1307 = vmul.f32 %v1301, %v1199
    %v1308 = vadd.f32 %v1306, %v1307
    %s1309 = scalar_lea.vmem [#allocation4], 40
    %1310 = vst [vmem:[%s1309] sm:$0xff] %v1308
    %1311 = vst [vmem:[#allocation2] sm:$0xff] %v1308
    %v1312 = vld [vmem:[#allocation2] sm:$0xff]
    %s1313 = smul.u32 6, 3
    %s1314 = smul.addr %s1313, 8
    %s1315 = scalar_lea.vmem [#allocation3], %s1314
    %v1316 = vld [vmem:[%s1315] sm:$0xff]
    %v1317 = vld [vmem:[%s1315 + $0x8] sm:$0xff]
    %v1318 = vld [vmem:[%s1315 + $0x10] sm:$0xff]
    %v1319 = vpack.c.bf16 %v1312, %v1312
    %1320 = vmatprep.subr.bf16.mxu0 %v617
    %1321 = vmatpush1.bf16.msra.mxu0 %v616
    %1322 = vmatprep.subr.bf16.mxu0 %v614
    %1323 = vmatpush1.bf16.msra.mxu0 %v613
    %1324 = vmatprep.subr.bf16.mxu0 %v611
    %1325 = vmatpush1.bf16.msra.mxu0 %v610
    %1326 = vmatprep.subr.bf16.mxu0 %v608
    %1327 = vmatpush1.bf16.msra.mxu0 %v607
    %1328 = vmatprep.subr.bf16.mxu0 %v605
    %1329 = vmatpush1.bf16.msra.mxu0 %v604
    %1330 = vmatprep.subr.bf16.mxu0 %v602
    %1331 = vmatpush1.bf16.msra.mxu0 %v601
    %1332 = vmatprep.subr.bf16.mxu0 %v599
    %1333 = vmatpush1.bf16.msra.mxu0 %v598
    %1334 = vmatprep.subr.bf16.mxu0 %v596
    %1335 = vmatpush1.bf16.msra.mxu0 %v595
    %1336 = vmatprep.subr.bf16.mxu0 0
    %1337 = vmatpush2.bf16.msra.mxu0 0
    %1338 = vmatprep.subr.bf16.mxu0 0
    %1339 = vmatpush2.bf16.msra.mxu0 0
    %1340 = vmatprep.subr.bf16.mxu0 0
    %1341 = vmatpush2.bf16.msra.mxu0 0
    %1342 = vmatprep.subr.bf16.mxu0 0
    %1343 = vmatpush2.bf16.msra.mxu0 0
    %1344 = vmatprep.subr.bf16.mxu0 0
    %1345 = vmatpush2.bf16.msra.mxu0 0
    %1346 = vmatprep.subr.bf16.mxu0 0
    %1347 = vmatpush2.bf16.msra.mxu0 0
    %1348 = vmatprep.subr.bf16.mxu0 0
    %1349 = vmatpush2.bf16.msra.mxu0 0
    %1350 = vmatprep.subr.bf16.mxu0 0
    %1351 = vmatpush2.bf16.msra.mxu0 0
    %1352 = vmatprep.mubr.bf16.mxu0 0
    %1353 = vmatmul.mubr.bf16.gmra.mxu0 %v1319
    %v1354 = vpop.f32.mrf.mxu0
    %v1355 = vadd.f32 %v503, %v1354
    %v1356 = vpop.f32.mrf.mxu0
    %v1357 = vadd.f32 %v507, %v1356
    %v1358 = vpop.f32.mrf.mxu0
    %v1359 = vpop.f32.mrf.mxu0
    %1360 = vdwg.mxu0
    %1361 = vmatprep.subr.bf16.mxu0 0
    %1362 = vmatpush1.bf16.msra.mxu0 %v618
    %1363 = vmatprep.subr.bf16.mxu0 0
    %1364 = vmatpush1.bf16.msra.mxu0 %v615
    %1365 = vmatprep.subr.bf16.mxu0 0
    %1366 = vmatpush1.bf16.msra.mxu0 %v612
    %1367 = vmatprep.subr.bf16.mxu0 0
    %1368 = vmatpush1.bf16.msra.mxu0 %v609
    %1369 = vmatprep.subr.bf16.mxu0 0
    %1370 = vmatpush1.bf16.msra.mxu0 %v606
    %1371 = vmatprep.subr.bf16.mxu0 0
    %1372 = vmatpush1.bf16.msra.mxu0 %v603
    %1373 = vmatprep.subr.bf16.mxu0 0
    %1374 = vmatpush1.bf16.msra.mxu0 %v600
    %1375 = vmatprep.subr.bf16.mxu0 0
    %1376 = vmatpush1.bf16.msra.mxu0 %v597
    %1377 = vmatprep.subr.bf16.mxu0 0
    %1378 = vmatpush2.bf16.msra.mxu0 0
    %1379 = vmatprep.subr.bf16.mxu0 0
    %1380 = vmatpush2.bf16.msra.mxu0 0
    %1381 = vmatprep.subr.bf16.mxu0 0
    %1382 = vmatpush2.bf16.msra.mxu0 0
    %1383 = vmatprep.subr.bf16.mxu0 0
    %1384 = vmatpush2.bf16.msra.mxu0 0
    %1385 = vmatprep.subr.bf16.mxu0 0
    %1386 = vmatpush2.bf16.msra.mxu0 0
    %1387 = vmatprep.subr.bf16.mxu0 0
    %1388 = vmatpush2.bf16.msra.mxu0 0
    %1389 = vmatprep.subr.bf16.mxu0 0
    %1390 = vmatpush2.bf16.msra.mxu0 0
    %1391 = vmatprep.subr.bf16.mxu0 0
    %1392 = vmatpush2.bf16.msra.mxu0 0
    %1393 = vmatprep.mubr.bf16.mxu0 0
    %1394 = vmatmul.mubr.bf16.gmra.mxu0 %v1319
    %v1395 = vpop.f32.mrf.mxu0
    %v1396 = vadd.f32 %v511, %v1395
    %v1397 = vpop.f32.mrf.mxu0
    %v1398 = vpop.f32.mrf.mxu0
    %v1399 = vpop.f32.mrf.mxu0
    %1400 = vdwg.mxu0
    %v1401 = vadd.f32 %v1316, %v1355
    %v1402 = vxor.u32 %v1401, 2147483648
    %v1403 = vmul.f32 %v1402, 1.442695
    %v1404 = vpow.pop %v1403
    %v1405 = vadd.f32 %v1404, 1.0
    %v1406 = vrcp.pop %v1405
    %v1407 = vmul.f32 1.0, %v1406
    %v1408 = vadd.f32 %v1317, %v1357
    %v1409 = vxor.u32 %v1408, 2147483648
    %v1410 = vmul.f32 %v1409, 1.442695
    %v1411 = vpow.pop %v1410
    %v1412 = vadd.f32 %v1411, 1.0
    %v1413 = vrcp.pop %v1412
    %v1414 = vmul.f32 1.0, %v1413
    %v1415 = vmul.f32 %v1407, %v1396
    %v1416 = vadd.f32 %v1318, %v1415
    %v1417 = vtanh.pop %v1416
    %v1418 = vsub.f32 1.0, %v1414
    %v1419 = vmul.f32 %v1418, %v1417
    %v1420 = vmul.f32 %v1414, %v1312
    %v1421 = vadd.f32 %v1419, %v1420
    %s1422 = scalar_lea.vmem [#allocation4], 48
    %1423 = vst [vmem:[%s1422] sm:$0xff] %v1421
    %1424 = vst [vmem:[#allocation2] sm:$0xff] %v1421
    %v1425 = vld [vmem:[#allocation2] sm:$0xff]
    %s1426 = smul.u32 7, 3
    %s1427 = smul.addr %s1426, 8
    %s1428 = scalar_lea.vmem [#allocation3], %s1427
    %v1429 = vld [vmem:[%s1428] sm:$0xff]
    %v1430 = vld [vmem:[%s1428 + $0x8] sm:$0xff]
    %v1431 = vld [vmem:[%s1428 + $0x10] sm:$0xff]
    %v1432 = vpack.c.bf16 %v1425, %v1425
    %1433 = vmatprep.subr.bf16.mxu0 %v617
    %1434 = vmatpush1.bf16.msra.mxu0 %v616
    %1435 = vmatprep.subr.bf16.mxu0 %v614
    %1436 = vmatpush1.bf16.msra.mxu0 %v613
    %1437 = vmatprep.subr.bf16.mxu0 %v611
    %1438 = vmatpush1.bf16.msra.mxu0 %v610
    %1439 = vmatprep.subr.bf16.mxu0 %v608
    %1440 = vmatpush1.bf16.msra.mxu0 %v607
    %1441 = vmatprep.subr.bf16.mxu0 %v605
    %1442 = vmatpush1.bf16.msra.mxu0 %v604
    %1443 = vmatprep.subr.bf16.mxu0 %v602
    %1444 = vmatpush1.bf16.msra.mxu0 %v601
    %1445 = vmatprep.subr.bf16.mxu0 %v599
    %1446 = vmatpush1.bf16.msra.mxu0 %v598
    %1447 = vmatprep.subr.bf16.mxu0 %v596
    %1448 = vmatpush1.bf16.msra.mxu0 %v595
    %1449 = vmatprep.subr.bf16.mxu0 0
    %1450 = vmatpush2.bf16.msra.mxu0 0
    %1451 = vmatprep.subr.bf16.mxu0 0
    %1452 = vmatpush2.bf16.msra.mxu0 0
    %1453 = vmatprep.subr.bf16.mxu0 0
    %1454 = vmatpush2.bf16.msra.mxu0 0
    %1455 = vmatprep.subr.bf16.mxu0 0
    %1456 = vmatpush2.bf16.msra.mxu0 0
    %1457 = vmatprep.subr.bf16.mxu0 0
    %1458 = vmatpush2.bf16.msra.mxu0 0
    %1459 = vmatprep.subr.bf16.mxu0 0
    %1460 = vmatpush2.bf16.msra.mxu0 0
    %1461 = vmatprep.subr.bf16.mxu0 0
    %1462 = vmatpush2.bf16.msra.mxu0 0
    %1463 = vmatprep.subr.bf16.mxu0 0
    %1464 = vmatpush2.bf16.msra.mxu0 0
    %1465 = vmatprep.mubr.bf16.mxu0 0
    %1466 = vmatmul.mubr.bf16.gmra.mxu0 %v1432
    %v1467 = vpop.f32.mrf.mxu0
    %v1468 = vadd.f32 %v503, %v1467
    %v1469 = vpop.f32.mrf.mxu0
    %v1470 = vadd.f32 %v507, %v1469
    %v1471 = vpop.f32.mrf.mxu0
    %v1472 = vpop.f32.mrf.mxu0
    %1473 = vdwg.mxu0
    %1474 = vmatprep.subr.bf16.mxu0 0
    %1475 = vmatpush1.bf16.msra.mxu0 %v618
    %1476 = vmatprep.subr.bf16.mxu0 0
    %1477 = vmatpush1.bf16.msra.mxu0 %v615
    %1478 = vmatprep.subr.bf16.mxu0 0
    %1479 = vmatpush1.bf16.msra.mxu0 %v612
    %1480 = vmatprep.subr.bf16.mxu0 0
    %1481 = vmatpush1.bf16.msra.mxu0 %v609
    %1482 = vmatprep.subr.bf16.mxu0 0
    %1483 = vmatpush1.bf16.msra.mxu0 %v606
    %1484 = vmatprep.subr.bf16.mxu0 0
    %1485 = vmatpush1.bf16.msra.mxu0 %v603
    %1486 = vmatprep.subr.bf16.mxu0 0
    %1487 = vmatpush1.bf16.msra.mxu0 %v600
    %1488 = vmatprep.subr.bf16.mxu0 0
    %1489 = vmatpush1.bf16.msra.mxu0 %v597
    %1490 = vmatprep.subr.bf16.mxu0 0
    %1491 = vmatpush2.bf16.msra.mxu0 0
    %1492 = vmatprep.subr.bf16.mxu0 0
    %1493 = vmatpush2.bf16.msra.mxu0 0
    %1494 = vmatprep.subr.bf16.mxu0 0
    %1495 = vmatpush2.bf16.msra.mxu0 0
    %1496 = vmatprep.subr.bf16.mxu0 0
    %1497 = vmatpush2.bf16.msra.mxu0 0
    %1498 = vmatprep.subr.bf16.mxu0 0
    %1499 = vmatpush2.bf16.msra.mxu0 0
    %1500 = vmatprep.subr.bf16.mxu0 0
    %1501 = vmatpush2.bf16.msra.mxu0 0
    %1502 = vmatprep.subr.bf16.mxu0 0
    %1503 = vmatpush2.bf16.msra.mxu0 0
    %1504 = vmatprep.subr.bf16.mxu0 0
    %1505 = vmatpush2.bf16.msra.mxu0 0
    %1506 = vmatprep.mubr.bf16.mxu0 0
    %1507 = vmatmul.mubr.bf16.gmra.mxu0 %v1432
    %v1508 = vpop.f32.mrf.mxu0
    %v1509 = vadd.f32 %v511, %v1508
    %v1510 = vpop.f32.mrf.mxu0
    %v1511 = vpop.f32.mrf.mxu0
    %v1512 = vpop.f32.mrf.mxu0
    %1513 = vdwg.mxu0
    %v1514 = vadd.f32 %v1429, %v1468
    %v1515 = vxor.u32 %v1514, 2147483648
    %v1516 = vmul.f32 %v1515, 1.442695
    %v1517 = vpow.pop %v1516
    %v1518 = vadd.f32 %v1517, 1.0
    %v1519 = vrcp.pop %v1518
    %v1520 = vmul.f32 1.0, %v1519
    %v1521 = vadd.f32 %v1430, %v1470
    %v1522 = vxor.u32 %v1521, 2147483648
    %v1523 = vmul.f32 %v1522, 1.442695
    %v1524 = vpow.pop %v1523
    %v1525 = vadd.f32 %v1524, 1.0
    %v1526 = vrcp.pop %v1525
    %v1527 = vmul.f32 1.0, %v1526
    %v1528 = vmul.f32 %v1520, %v1509
    %v1529 = vadd.f32 %v1431, %v1528
    %v1530 = vtanh.pop %v1529
    %v1531 = vsub.f32 1.0, %v1527
    %v1532 = vmul.f32 %v1531, %v1530
    %v1533 = vmul.f32 %v1527, %v1425
    %v1534 = vadd.f32 %v1532, %v1533
    %s1535 = scalar_lea.vmem [#allocation4], 56
    %1536 = vst [vmem:[%s1535] sm:$0xff] %v1534
    %1537 = vst [vmem:[#allocation2] sm:$0xff] %v1534
    %v1538 = vld [vmem:[#allocation4] sm:$0xff]
    %v1539 = vld [vmem:[#allocation4 + $0x8] sm:$0xff]
    %v1540 = vld [vmem:[#allocation4 + $0x10] sm:$0xff]
    %v1541 = vld [vmem:[#allocation4 + $0x18] sm:$0xff]
    %v1542 = vld [vmem:[#allocation4 + $0x20] sm:$0xff]
    %v1543 = vld [vmem:[#allocation4 + $0x28] sm:$0xff]
    %v1544 = vld [vmem:[#allocation4 + $0x30] sm:$0xff]
    %v1545 = vld [vmem:[#allocation4 + $0x38] sm:$0xff]
    %v1546 = vpack.c.bf16 %v1539, %v1538
    %v1547 = vpack.c.bf16 %v1541, %v1540
    %v1548 = vpack.c.bf16 %v1543, %v1542
    %v1549 = vpack.c.bf16 %v1545, %v1544
    %v1554 = vunpack.c.l.b16 %v1546
    %v1555 = vunpack.c.h.b16 %v1546
    %v1556 = vunpack.c.l.b16 %v1547
    %v1557 = vunpack.c.h.b16 %v1547
    %v1558 = vunpack.c.l.b16 %v1548
    %v1559 = vunpack.c.h.b16 %v1548
    %v1560 = vunpack.c.l.b16 %v1549
    %v1561 = vunpack.c.h.b16 %v1549
    %v1562 = vpack.c.b16 %v1554, %v1554
    %v1563 = vpack.c.b16 %v1555, %v1555
    %v1564 = vpack.c.b16 %v1556, %v1556
    %v1565 = vpack.c.b16 %v1557, %v1557
    %v1566 = vpack.c.b16 %v1558, %v1558
    %v1567 = vpack.c.b16 %v1559, %v1559
    %v1568 = vpack.c.b16 %v1560, %v1560
    %v1569 = vpack.c.b16 %v1561, %v1561
    %1578 = vst [vmem:[#allocation13] sm:$0xf] %v1562
    %1579 = vst [vmem:[#allocation13 + $0x4] sm:$0xf] %v1563
    %1580 = vst [vmem:[#allocation13 + $0x8] sm:$0xf] %v1564
    %1581 = vst [vmem:[#allocation13 + $0xc] sm:$0xf] %v1565
    %1582 = vst [vmem:[#allocation13 + $0x10] sm:$0xf] %v1566
    %1583 = vst [vmem:[#allocation13 + $0x14] sm:$0xf] %v1567
    %1584 = vst [vmem:[#allocation13 + $0x18] sm:$0xf] %v1568
    %1585 = vst [vmem:[#allocation13 + $0x1c] sm:$0xf] %v1569
    // Predicated region
    $region46: #{tpu_custom_call.1} parent=1 // pred_check
      %p1586 = pneg %p81
    $region47: #{tpu_custom_call.1} parent=1 // pred_check_branch
      %1588 = sbr.rel (%p1586) target = $region49
    $region48: #{tpu_custom_call.1} parent=1 // pred_region
      %v1589 = vld [vmem:[#allocation2] sm:$0xff]
      %1590 = vst [vmem:[#allocation14] sm:$0xff] %v1589
    $region49: #{tpu_custom_call.1} parent=1 // pred_fallthru
      _
    // Predicated region
    $region50: #{tpu_custom_call.1} parent=1 // pred_check
      _
    $region51: #{tpu_custom_call.1} parent=1 // pred_check_branch
      %1592 = sbr.rel (0) target = $region53
    $region52: #{tpu_custom_call.1} parent=1 // pred_region
      %s1594 = ssub.s32 512, 512
      %1595 = vsyncadd [#allocation7], %s1594
      %s1596 = sshll.u32 [#allocation13], 4
      %s1597 = int_to_ptr.vmem [resolvable:$true] %s1596
      %1602 = dma.vmem_to_hbm [thread:$0]  %s1597, 512, %s6, [#allocation7], 64, 64, 4
    $region53: #{tpu_custom_call.1} parent=1 // pred_fallthru
      _
    // Predicated region
    $region54: #{tpu_custom_call.1} parent=1 // pred_check
      _
    $region55: #{tpu_custom_call.1} parent=1 // pred_check_branch
      %1604 = sbr.rel (0) target = $region57
    $region56: #{tpu_custom_call.1} parent=1 // pred_region
      %s1606 = ssub.s32 128, 128
      %1607 = vsyncadd [#allocation15], %s1606
      %s1609 = sshll.u32 [#allocation14], 4
      %s1610 = int_to_ptr.vmem [resolvable:$true] %s1609
      %1612 = dma.vmem_to_hbm [thread:$0]  %s1610, 128, %s7, [#allocation15]
    $region57: #{tpu_custom_call.1} parent=1 // pred_fallthru
      _
    // Predicated region
    $region58: #{tpu_custom_call.1} parent=1 // pred_check
      _
    $region59: #{tpu_custom_call.1} parent=1 // pred_check_branch
      %1614 = sbr.rel (0) target = $region61
    $region60: #{tpu_custom_call.1} parent=1 // pred_region
      %1615 = dma.done [#allocation7], 512
    $region61: #{tpu_custom_call.1} parent=1 // pred_fallthru
      _
    // Predicated region
    $region62: #{tpu_custom_call.1} parent=1 // pred_check
      _
    $region63: #{tpu_custom_call.1} parent=1 // pred_check_branch
      %1617 = sbr.rel (0) target = $region65
    $region64: #{tpu_custom_call.1} parent=1 // pred_region
      %1618 = dma.done [#allocation15], 128
    $region65: #{tpu_custom_call.1} parent=1 // pred_fallthru
      _
    %1619 = vsyncpa [#allocation6], 1
    %1620 = vsyncpa [#allocation9], 1
    %1621 = vsyncpa [#allocation12], 1
    %1622 = vsyncpa [#allocation7], 1
    %1623 = vsyncpa [#allocation15], 1

</llo_original>
